<compile_context>
chip_gen: v6e
topology: v6e:2x2x1
jax: 0.10.0
libtpu: 0.0.40
codegen_flags: <defaults>
</compile_context>

<pallas_src>
import jax
import jax.numpy as jnp
from jax import lax
from jax.experimental import pallas as pl
from jax.experimental.pallas import tpu as pltpu


def _round_up(n: int, m: int) -> int:
    return ((n + m - 1) // m) * m


def lstm_fc_kernel(x_ref, w_ih_ref, w_hh_ref, b_ref, w_fc_ref, b_fc_ref,
                   out_ref, gx_ref):
    """One batch tile: single-layer LSTM over time + Linear on the final h.

    x_ref    : (T, BB, Ip)    f32  time-major input tile
    w_ih_ref : (Ip, 4*Hp)     f32  gate blocks [i,f,g,o], each 128-aligned
    w_hh_ref : (Hp, 4*Hp)     f32
    b_ref    : (1, 4*Hp)      f32  bias_ih + bias_hh (pre-summed)
    w_fc_ref : (Hp, Op)       f32
    b_fc_ref : (1, Op)        f32
    out_ref  : (BB, Op)       f32
    gx_ref   : (T, BB, 4*Hp)  f32  scratch: hoisted input projection
    """
    T, BB, Ip = x_ref.shape
    Hp = w_hh_ref.shape[0]

    # ---- Hoisted input projection: one big MXU matmul (bf16 in, f32 acc).
    # Bias added once here instead of re-broadcast every timestep. ----
    x2d = x_ref[...].reshape(T * BB, Ip).astype(jnp.bfloat16)
    w_ih = w_ih_ref[...].astype(jnp.bfloat16)
    gx = jnp.dot(x2d, w_ih, preferred_element_type=jnp.float32) + b_ref[...]
    gx_ref[...] = gx.reshape(T, BB, 4 * Hp)

    w_hh = w_hh_ref[...].astype(jnp.bfloat16)  # hoisted cast

    h0 = jnp.zeros((BB, Hp), jnp.float32)
    c0 = jnp.zeros((BB, Hp), jnp.float32)

    def step(t, carry):
        h, c = carry
        # Only the unavoidable serial part lives in the loop.
        gates = gx_ref[t] + jnp.dot(h.astype(jnp.bfloat16), w_hh,
                                    preferred_element_type=jnp.float32)
        # Lane-aligned static slices (Hp % 128 == 0); gate math stays in f32.
        i_g = jax.nn.sigmoid(gates[:, 0 * Hp:1 * Hp])
        f_g = jax.nn.sigmoid(gates[:, 1 * Hp:2 * Hp])
        g_g = jnp.tanh(gates[:, 2 * Hp:3 * Hp])
        o_g = jax.nn.sigmoid(gates[:, 3 * Hp:4 * Hp])
        c_new = f_g * c + i_g * g_g
        h_new = o_g * jnp.tanh(c_new)
        return h_new, c_new

    # T is static -> fully unroll the short serial recurrence for LLO overlap.
    h_final, _ = lax.fori_loop(0, T, step, (h0, c0), unroll=True)

    # Final FC with a lane-dense (Op % 128 == 0) output store.
    out_ref[...] = (jnp.dot(h_final.astype(jnp.bfloat16),
                            w_fc_ref[...].astype(jnp.bfloat16),
                            preferred_element_type=jnp.float32)
                    + b_fc_ref[...])


def _pad_gate_mat(w, rows_p, H, Hp):
    """(rows, 4H) -> (rows_p, 4Hp); gate block k goes to cols [k*Hp, k*Hp+H)."""
    rows = w.shape[0]
    out = jnp.zeros((rows_p, 4 * Hp), jnp.float32)
    for k in range(4):
        out = out.at[:rows, k * Hp:k * Hp + H].set(w[:, k * H:(k + 1) * H])
    return out


def lstm_model_forward(x, params, *, batch_block=8):
    """Pallas-backed equivalent of LSTMModel.forward(x). x: (B, T, I) f32."""
    B, T, I = x.shape
    H = params["w_hh"].shape[0]
    O = params["w_fc"].shape[1]

    Bp = _round_up(B, batch_block)
    Ip = _round_up(I, 128)
    Hp = _round_up(H, 128)
    Op = _round_up(O, 128)

    # Pad to (8, 128) granularity; zeros are exactly neutral for the LSTM.
    xp = jnp.zeros((Bp, T, Ip), jnp.float32).at[:B, :, :I].set(x)
    xp = jnp.transpose(xp, (1, 0, 2))                  # time-major: (T, Bp, Ip)

    w_ih = _pad_gate_mat(params["w_ih"], Ip, H, Hp)    # (Ip, 4Hp)
    w_hh = _pad_gate_mat(params["w_hh"], Hp, H, Hp)    # (Hp, 4Hp)
    b = _pad_gate_mat(params["b"], 1, H, Hp)           # (1, 4Hp)
    w_fc = jnp.zeros((Hp, Op), jnp.float32).at[:H, :O].set(params["w_fc"])
    b_fc = jnp.zeros((1, Op), jnp.float32).at[:, :O].set(params["b_fc"])

    grid = (Bp // batch_block,)
    # TODO(synk): for production-sized T, stream x in T-chunks (BlockSpec over
    # time or manual double-buffering) instead of keeping the whole sequence
    # resident in VMEM (64 MiB per TC on v7x).
    out_p = pl.pallas_call(
        lstm_fc_kernel,
        out_shape=jax.ShapeDtypeStruct((Bp, Op), jnp.float32),
        grid=grid,
        in_specs=[
            pl.BlockSpec((T, batch_block, Ip), lambda i: (0, i, 0)),
            pl.BlockSpec((Ip, 4 * Hp), lambda i: (0, 0)),
            pl.BlockSpec((Hp, 4 * Hp), lambda i: (0, 0)),
            pl.BlockSpec((1, 4 * Hp), lambda i: (0, 0)),
            pl.BlockSpec((Hp, Op), lambda i: (0, 0)),
            pl.BlockSpec((1, Op), lambda i: (0, 0)),
        ],
        out_specs=pl.BlockSpec((batch_block, Op), lambda i: (i, 0)),
        scratch_shapes=[pltpu.VMEM((T, batch_block, 4 * Hp), jnp.float32)],
        compiler_params=pltpu.CompilerParams(
            dimension_semantics=("parallel",)),  # batch tiles -> megacore/2 TCs
    )(xp, w_ih, w_hh, b, w_fc, b_fc)

    return out_p[:B, :O]


def init_params(key, input_size, hidden_size, output_size):
    """Synthetic init matching PyTorch parameter shapes (stored transposed)."""
    k = jax.random.split(key, 6)
    s = 1.0 / jnp.sqrt(hidden_size)
    w_ih = jax.random.uniform(k[0], (input_size, 4 * hidden_size), jnp.float32, -s, s)
    w_hh = jax.random.uniform(k[1], (hidden_size, 4 * hidden_size), jnp.float32, -s, s)
    b_ih = jax.random.uniform(k[2], (1, 4 * hidden_size), jnp.float32, -s, s)
    b_hh = jax.random.uniform(k[3], (1, 4 * hidden_size), jnp.float32, -s, s)
    w_fc = jax.random.uniform(k[4], (hidden_size, output_size), jnp.float32, -s, s)
    b_fc = jax.random.uniform(k[5], (1, output_size), jnp.float32, -s, s)
    return {"w_ih": w_ih, "w_hh": w_hh, "b": b_ih + b_hh,
            "w_fc": w_fc, "b_fc": b_fc}


def reference_forward(x, params, *, bf16_matmul=False):
    """Pure-JAX reference. bf16_matmul=True mirrors the kernel's numerics."""
    B, T, I = x.shape
    H = params["w_hh"].shape[0]
    cast = (lambda a: a.astype(jnp.bfloat16)) if bf16_matmul else (lambda a: a)
    w_ih, w_hh, w_fc = cast(params["w_ih"]), cast(params["w_hh"]), cast(params["w_fc"])
    h = jnp.zeros((B, H), jnp.float32)
    c = jnp.zeros((B, H), jnp.float32)
    for t in range(T):
        gates = (jnp.dot(cast(x[:, t, :]), w_ih, preferred_element_type=jnp.float32)
                 + jnp.dot(cast(h), w_hh, preferred_element_type=jnp.float32)
                 + params["b"])
        i_g = jax.nn.sigmoid(gates[:, 0 * H:1 * H])
        f_g = jax.nn.sigmoid(gates[:, 1 * H:2 * H])
        g_g = jnp.tanh(gates[:, 2 * H:3 * H])
        o_g = jax.nn.sigmoid(gates[:, 3 * H:4 * H])
        c = f_g * c + i_g * g_g
        h = o_g * jnp.tanh(c)
    return (jnp.dot(cast(h), w_fc, preferred_element_type=jnp.float32)
            + params["b_fc"])


if __name__ == "__main__":
    # Small shapes consistent with the module's forward:
    # batch=2, seq=8, input_size=16, hidden_size=32, output_size=1
    B, T, I, H, O = 2, 8, 16, 32, 1

    key = jax.random.PRNGKey(0)
    kx, kp = jax.random.split(key)
    x = jax.random.normal(kx, (B, T, I), jnp.float32)
    params = init_params(kp, I, H, O)

    out = jax.block_until_ready(lstm_model_forward(x, params))
    assert out.shape == (B, O)

    # Tight check vs. a reference mirroring the kernel's bf16-in / f32-acc math.
    ref_bf16 = reference_forward(x, params, bf16_matmul=True)
    assert jnp.allclose(out, ref_bf16, atol=1e-3, rtol=1e-3), (out, ref_bf16)

    # Looser semantic check vs. the full-f32 reference (bf16 matmul inputs).
    ref_f32 = reference_forward(x, params, bf16_matmul=False)
    assert jnp.allclose(out, ref_f32, atol=5e-2, rtol=5e-2), (out, ref_f32)

    print("KERNEL_OK")
</pallas_src>

<mosaic_0001>
module attributes {stable_mosaic.version = 11 : i64} {
  func.func @lstm_fc_kernel(%arg0: i32, %arg1: memref<8x8x128xf32, #tpu.memory_space<vmem>>, %arg2: memref<128x512xf32, #tpu.memory_space<vmem>>, %arg3: memref<128x512xf32, #tpu.memory_space<vmem>>, %arg4: memref<1x512xf32, #tpu.memory_space<vmem>>, %arg5: memref<128x128xf32, #tpu.memory_space<vmem>>, %arg6: memref<1x128xf32, #tpu.memory_space<vmem>>, %arg7: memref<8x128xf32, #tpu.memory_space<vmem>>, %arg8: memref<8x8x512xf32, #tpu.memory_space<vmem>>) attributes {dimension_semantics = [#tpu.dimension_semantics<parallel>], iteration_bounds = array<i64: 1>, scalar_prefetch = 0 : i64, scratch_operands = 1 : i64, tpu.core_type = #tpu.core_type<tc>, window_params = [{transform_indices = @transform_0, window_bounds = array<i64: 8, 8, 128>}, {pipeline_mode = #tpu.pipeline_mode<synchronous>, transform_indices = @transform_1, window_bounds = array<i64: 128, 512>}, {pipeline_mode = #tpu.pipeline_mode<synchronous>, transform_indices = @transform_2, window_bounds = array<i64: 128, 512>}, {pipeline_mode = #tpu.pipeline_mode<synchronous>, transform_indices = @transform_3, window_bounds = array<i64: 1, 512>}, {pipeline_mode = #tpu.pipeline_mode<synchronous>, transform_indices = @transform_4, window_bounds = array<i64: 128, 128>}, {pipeline_mode = #tpu.pipeline_mode<synchronous>, transform_indices = @transform_5, window_bounds = array<i64: 1, 128>}, {transform_indices = @transform_6, window_bounds = array<i64: 8, 128>}]} {
    %c0 = arith.constant 0 : index
    %c0_0 = arith.constant 0 : index
    %c0_1 = arith.constant 0 : index
    %0 = vector.load %arg1[%c0, %c0_0, %c0_1] : memref<8x8x128xf32, #tpu.memory_space<vmem>>, vector<8x8x128xf32>
    %1 = vector.shape_cast %0 : vector<8x8x128xf32> to vector<64x128xf32>
    %2 = arith.truncf %1 : vector<64x128xf32> to vector<64x128xbf16>
    %c0_2 = arith.constant 0 : index
    %c0_3 = arith.constant 0 : index
    %3 = vector.load %arg2[%c0_2, %c0_3] : memref<128x512xf32, #tpu.memory_space<vmem>>, vector<128x512xf32>
    %4 = arith.truncf %3 : vector<128x512xf32> to vector<128x512xbf16>
    %cst = arith.constant dense<0.000000e+00> : vector<64x512xf32>
    %5 = tpu.matmul %2, %4, %cst {dimension_numbers = #tpu.dot_dimension_numbers<[1], [0], [0], [1], [0, 0, 1, 1], [], []>} : vector<64x128xbf16>, vector<128x512xbf16>, vector<64x512xf32> -> vector<64x512xf32>
    %c0_4 = arith.constant 0 : index
    %c0_5 = arith.constant 0 : index
    %6 = vector.load %arg4[%c0_4, %c0_5] : memref<1x512xf32, #tpu.memory_space<vmem>>, vector<1x512xf32>
    %7 = vector.broadcast %6 : vector<1x512xf32> to vector<64x512xf32>
    %8 = arith.addf %5, %7 : vector<64x512xf32>
    %9 = vector.shape_cast %8 : vector<64x512xf32> to vector<8x8x512xf32>
    %c0_6 = arith.constant 0 : index
    %c0_7 = arith.constant 0 : index
    %c0_8 = arith.constant 0 : index
    %10 = vector.load %arg8[%c0_6, %c0_7, %c0_8] : memref<8x8x512xf32, #tpu.memory_space<vmem>>, vector<8x8x512xf32>
    tpu.vector_store %arg8[%c0_6, %c0_7, %c0_8], %9 {strides = array<i32>} : memref<8x8x512xf32, #tpu.memory_space<vmem>>, vector<8x8x512xf32>,
    %c0_9 = arith.constant 0 : index
    %c0_10 = arith.constant 0 : index
    %11 = vector.load %arg3[%c0_9, %c0_10] : memref<128x512xf32, #tpu.memory_space<vmem>>, vector<128x512xf32>
    %12 = arith.truncf %11 : vector<128x512xf32> to vector<128x512xbf16>
    %cst_11 = arith.constant 0.000000e+00 : f32
    %13 = vector.broadcast %cst_11 : f32 to vector<8x128xf32>
    %cst_12 = arith.constant 0.000000e+00 : f32
    %14 = vector.broadcast %cst_12 : f32 to vector<8x128xf32>
    %c0_i32 = arith.constant 0 : i32
    %15 = arith.index_cast %c0_i32 : i32 to index
    %c0_13 = arith.constant 0 : index
    %c0_14 = arith.constant 0 : index
    %16 = vector.load %arg8[%15, %c0_13, %c0_14] : memref<8x8x512xf32, #tpu.memory_space<vmem>>, vector<1x8x512xf32>
    %17 = vector.shape_cast %16 : vector<1x8x512xf32> to vector<8x512xf32>
    %18 = arith.truncf %13 : vector<8x128xf32> to vector<8x128xbf16>
    %cst_15 = arith.constant dense<0.000000e+00> : vector<8x512xf32>
    %19 = tpu.matmul %18, %12, %cst_15 {dimension_numbers = #tpu.dot_dimension_numbers<[1], [0], [0], [1], [0, 0, 1, 1], [], []>} : vector<8x128xbf16>, vector<128x512xbf16>, vector<8x512xf32> -> vector<8x512xf32>
    %20 = arith.addf %17, %19 : vector<8x512xf32>
    %21 = vector.extract_strided_slice %20 {offsets = [0, 0], sizes = [8, 128], strides = [1, 1]} : vector<8x512xf32> to vector<8x128xf32>
    %22 = arith.negf %21 : vector<8x128xf32>
    %23 = math.exp %22 : vector<8x128xf32>
    %cst_16 = arith.constant 1.000000e+00 : f32
    %24 = vector.broadcast %cst_16 : f32 to vector<8x128xf32>
    %25 = arith.addf %24, %23 : vector<8x128xf32>
    %26 = arith.divf %24, %25 : vector<8x128xf32>
    %27 = vector.extract_strided_slice %20 {offsets = [0, 128], sizes = [8, 128], strides = [1, 1]} : vector<8x512xf32> to vector<8x128xf32>
    %28 = arith.negf %27 : vector<8x128xf32>
    %29 = math.exp %28 : vector<8x128xf32>
    %cst_17 = arith.constant 1.000000e+00 : f32
    %30 = vector.broadcast %cst_17 : f32 to vector<8x128xf32>
    %31 = arith.addf %30, %29 : vector<8x128xf32>
    %32 = arith.divf %30, %31 : vector<8x128xf32>
    %33 = vector.extract_strided_slice %20 {offsets = [0, 256], sizes = [8, 128], strides = [1, 1]} : vector<8x512xf32> to vector<8x128xf32>
    %34 = math.tanh %33 : vector<8x128xf32>
    %35 = vector.extract_strided_slice %20 {offsets = [0, 384], sizes = [8, 128], strides = [1, 1]} : vector<8x512xf32> to vector<8x128xf32>
    %36 = arith.negf %35 : vector<8x128xf32>
    %37 = math.exp %36 : vector<8x128xf32>
    %cst_18 = arith.constant 1.000000e+00 : f32
    %38 = vector.broadcast %cst_18 : f32 to vector<8x128xf32>
    %39 = arith.addf %38, %37 : vector<8x128xf32>
    %40 = arith.divf %38, %39 : vector<8x128xf32>
    %41 = arith.mulf %32, %14 : vector<8x128xf32>
    %42 = arith.mulf %26, %34 : vector<8x128xf32>
    %43 = arith.addf %41, %42 : vector<8x128xf32>
    %44 = math.tanh %43 : vector<8x128xf32>
    %45 = arith.mulf %40, %44 : vector<8x128xf32>
    %c1_i32 = arith.constant 1 : i32
    %46 = arith.index_cast %c1_i32 : i32 to index
    %c0_19 = arith.constant 0 : index
    %c0_20 = arith.constant 0 : index
    %47 = vector.load %arg8[%46, %c0_19, %c0_20] : memref<8x8x512xf32, #tpu.memory_space<vmem>>, vector<1x8x512xf32>
    %48 = vector.shape_cast %47 : vector<1x8x512xf32> to vector<8x512xf32>
    %49 = arith.truncf %45 : vector<8x128xf32> to vector<8x128xbf16>
    %cst_21 = arith.constant dense<0.000000e+00> : vector<8x512xf32>
    %50 = tpu.matmul %49, %12, %cst_21 {dimension_numbers = #tpu.dot_dimension_numbers<[1], [0], [0], [1], [0, 0, 1, 1], [], []>} : vector<8x128xbf16>, vector<128x512xbf16>, vector<8x512xf32> -> vector<8x512xf32>
    %51 = arith.addf %48, %50 : vector<8x512xf32>
    %52 = vector.extract_strided_slice %51 {offsets = [0, 0], sizes = [8, 128], strides = [1, 1]} : vector<8x512xf32> to vector<8x128xf32>
    %53 = arith.negf %52 : vector<8x128xf32>
    %54 = math.exp %53 : vector<8x128xf32>
    %cst_22 = arith.constant 1.000000e+00 : f32
    %55 = vector.broadcast %cst_22 : f32 to vector<8x128xf32>
    %56 = arith.addf %55, %54 : vector<8x128xf32>
    %57 = arith.divf %55, %56 : vector<8x128xf32>
    %58 = vector.extract_strided_slice %51 {offsets = [0, 128], sizes = [8, 128], strides = [1, 1]} : vector<8x512xf32> to vector<8x128xf32>
    %59 = arith.negf %58 : vector<8x128xf32>
    %60 = math.exp %59 : vector<8x128xf32>
    %cst_23 = arith.constant 1.000000e+00 : f32
    %61 = vector.broadcast %cst_23 : f32 to vector<8x128xf32>
    %62 = arith.addf %61, %60 : vector<8x128xf32>
    %63 = arith.divf %61, %62 : vector<8x128xf32>
    %64 = vector.extract_strided_slice %51 {offsets = [0, 256], sizes = [8, 128], strides = [1, 1]} : vector<8x512xf32> to vector<8x128xf32>
    %65 = math.tanh %64 : vector<8x128xf32>
    %66 = vector.extract_strided_slice %51 {offsets = [0, 384], sizes = [8, 128], strides = [1, 1]} : vector<8x512xf32> to vector<8x128xf32>
    %67 = arith.negf %66 : vector<8x128xf32>
    %68 = math.exp %67 : vector<8x128xf32>
    %cst_24 = arith.constant 1.000000e+00 : f32
    %69 = vector.broadcast %cst_24 : f32 to vector<8x128xf32>
    %70 = arith.addf %69, %68 : vector<8x128xf32>
    %71 = arith.divf %69, %70 : vector<8x128xf32>
    %72 = arith.mulf %63, %43 : vector<8x128xf32>
    %73 = arith.mulf %57, %65 : vector<8x128xf32>
    %74 = arith.addf %72, %73 : vector<8x128xf32>
    %75 = math.tanh %74 : vector<8x128xf32>
    %76 = arith.mulf %71, %75 : vector<8x128xf32>
    %c2_i32 = arith.constant 2 : i32
    %77 = arith.index_cast %c2_i32 : i32 to index
    %c0_25 = arith.constant 0 : index
    %c0_26 = arith.constant 0 : index
    %78 = vector.load %arg8[%77, %c0_25, %c0_26] : memref<8x8x512xf32, #tpu.memory_space<vmem>>, vector<1x8x512xf32>
    %79 = vector.shape_cast %78 : vector<1x8x512xf32> to vector<8x512xf32>
    %80 = arith.truncf %76 : vector<8x128xf32> to vector<8x128xbf16>
    %cst_27 = arith.constant dense<0.000000e+00> : vector<8x512xf32>
    %81 = tpu.matmul %80, %12, %cst_27 {dimension_numbers = #tpu.dot_dimension_numbers<[1], [0], [0], [1], [0, 0, 1, 1], [], []>} : vector<8x128xbf16>, vector<128x512xbf16>, vector<8x512xf32> -> vector<8x512xf32>
    %82 = arith.addf %79, %81 : vector<8x512xf32>
    %83 = vector.extract_strided_slice %82 {offsets = [0, 0], sizes = [8, 128], strides = [1, 1]} : vector<8x512xf32> to vector<8x128xf32>
    %84 = arith.negf %83 : vector<8x128xf32>
    %85 = math.exp %84 : vector<8x128xf32>
    %cst_28 = arith.constant 1.000000e+00 : f32
    %86 = vector.broadcast %cst_28 : f32 to vector<8x128xf32>
    %87 = arith.addf %86, %85 : vector<8x128xf32>
    %88 = arith.divf %86, %87 : vector<8x128xf32>
    %89 = vector.extract_strided_slice %82 {offsets = [0, 128], sizes = [8, 128], strides = [1, 1]} : vector<8x512xf32> to vector<8x128xf32>
    %90 = arith.negf %89 : vector<8x128xf32>
    %91 = math.exp %90 : vector<8x128xf32>
    %cst_29 = arith.constant 1.000000e+00 : f32
    %92 = vector.broadcast %cst_29 : f32 to vector<8x128xf32>
    %93 = arith.addf %92, %91 : vector<8x128xf32>
    %94 = arith.divf %92, %93 : vector<8x128xf32>
    %95 = vector.extract_strided_slice %82 {offsets = [0, 256], sizes = [8, 128], strides = [1, 1]} : vector<8x512xf32> to vector<8x128xf32>
    %96 = math.tanh %95 : vector<8x128xf32>
    %97 = vector.extract_strided_slice %82 {offsets = [0, 384], sizes = [8, 128], strides = [1, 1]} : vector<8x512xf32> to vector<8x128xf32>
    %98 = arith.negf %97 : vector<8x128xf32>
    %99 = math.exp %98 : vector<8x128xf32>
    %cst_30 = arith.constant 1.000000e+00 : f32
    %100 = vector.broadcast %cst_30 : f32 to vector<8x128xf32>
    %101 = arith.addf %100, %99 : vector<8x128xf32>
    %102 = arith.divf %100, %101 : vector<8x128xf32>
    %103 = arith.mulf %94, %74 : vector<8x128xf32>
    %104 = arith.mulf %88, %96 : vector<8x128xf32>
    %105 = arith.addf %103, %104 : vector<8x128xf32>
    %106 = math.tanh %105 : vector<8x128xf32>
    %107 = arith.mulf %102, %106 : vector<8x128xf32>
    %c3_i32 = arith.constant 3 : i32
    %108 = arith.index_cast %c3_i32 : i32 to index
    %c0_31 = arith.constant 0 : index
    %c0_32 = arith.constant 0 : index
    %109 = vector.load %arg8[%108, %c0_31, %c0_32] : memref<8x8x512xf32, #tpu.memory_space<vmem>>, vector<1x8x512xf32>
    %110 = vector.shape_cast %109 : vector<1x8x512xf32> to vector<8x512xf32>
    %111 = arith.truncf %107 : vector<8x128xf32> to vector<8x128xbf16>
    %cst_33 = arith.constant dense<0.000000e+00> : vector<8x512xf32>
    %112 = tpu.matmul %111, %12, %cst_33 {dimension_numbers = #tpu.dot_dimension_numbers<[1], [0], [0], [1], [0, 0, 1, 1], [], []>} : vector<8x128xbf16>, vector<128x512xbf16>, vector<8x512xf32> -> vector<8x512xf32>
    %113 = arith.addf %110, %112 : vector<8x512xf32>
    %114 = vector.extract_strided_slice %113 {offsets = [0, 0], sizes = [8, 128], strides = [1, 1]} : vector<8x512xf32> to vector<8x128xf32>
    %115 = arith.negf %114 : vector<8x128xf32>
    %116 = math.exp %115 : vector<8x128xf32>
    %cst_34 = arith.constant 1.000000e+00 : f32
    %117 = vector.broadcast %cst_34 : f32 to vector<8x128xf32>
    %118 = arith.addf %117, %116 : vector<8x128xf32>
    %119 = arith.divf %117, %118 : vector<8x128xf32>
    %120 = vector.extract_strided_slice %113 {offsets = [0, 128], sizes = [8, 128], strides = [1, 1]} : vector<8x512xf32> to vector<8x128xf32>
    %121 = arith.negf %120 : vector<8x128xf32>
    %122 = math.exp %121 : vector<8x128xf32>
    %cst_35 = arith.constant 1.000000e+00 : f32
    %123 = vector.broadcast %cst_35 : f32 to vector<8x128xf32>
    %124 = arith.addf %123, %122 : vector<8x128xf32>
    %125 = arith.divf %123, %124 : vector<8x128xf32>
    %126 = vector.extract_strided_slice %113 {offsets = [0, 256], sizes = [8, 128], strides = [1, 1]} : vector<8x512xf32> to vector<8x128xf32>
    %127 = math.tanh %126 : vector<8x128xf32>
    %128 = vector.extract_strided_slice %113 {offsets = [0, 384], sizes = [8, 128], strides = [1, 1]} : vector<8x512xf32> to vector<8x128xf32>
    %129 = arith.negf %128 : vector<8x128xf32>
    %130 = math.exp %129 : vector<8x128xf32>
    %cst_36 = arith.constant 1.000000e+00 : f32
    %131 = vector.broadcast %cst_36 : f32 to vector<8x128xf32>
    %132 = arith.addf %131, %130 : vector<8x128xf32>
    %133 = arith.divf %131, %132 : vector<8x128xf32>
    %134 = arith.mulf %125, %105 : vector<8x128xf32>
    %135 = arith.mulf %119, %127 : vector<8x128xf32>
    %136 = arith.addf %134, %135 : vector<8x128xf32>
    %137 = math.tanh %136 : vector<8x128xf32>
    %138 = arith.mulf %133, %137 : vector<8x128xf32>
    %c4_i32 = arith.constant 4 : i32
    %139 = arith.index_cast %c4_i32 : i32 to index
    %c0_37 = arith.constant 0 : index
    %c0_38 = arith.constant 0 : index
    %140 = vector.load %arg8[%139, %c0_37, %c0_38] : memref<8x8x512xf32, #tpu.memory_space<vmem>>, vector<1x8x512xf32>
    %141 = vector.shape_cast %140 : vector<1x8x512xf32> to vector<8x512xf32>
    %142 = arith.truncf %138 : vector<8x128xf32> to vector<8x128xbf16>
    %cst_39 = arith.constant dense<0.000000e+00> : vector<8x512xf32>
    %143 = tpu.matmul %142, %12, %cst_39 {dimension_numbers = #tpu.dot_dimension_numbers<[1], [0], [0], [1], [0, 0, 1, 1], [], []>} : vector<8x128xbf16>, vector<128x512xbf16>, vector<8x512xf32> -> vector<8x512xf32>
    %144 = arith.addf %141, %143 : vector<8x512xf32>
    %145 = vector.extract_strided_slice %144 {offsets = [0, 0], sizes = [8, 128], strides = [1, 1]} : vector<8x512xf32> to vector<8x128xf32>
    %146 = arith.negf %145 : vector<8x128xf32>
    %147 = math.exp %146 : vector<8x128xf32>
    %cst_40 = arith.constant 1.000000e+00 : f32
    %148 = vector.broadcast %cst_40 : f32 to vector<8x128xf32>
    %149 = arith.addf %148, %147 : vector<8x128xf32>
    %150 = arith.divf %148, %149 : vector<8x128xf32>
    %151 = vector.extract_strided_slice %144 {offsets = [0, 128], sizes = [8, 128], strides = [1, 1]} : vector<8x512xf32> to vector<8x128xf32>
    %152 = arith.negf %151 : vector<8x128xf32>
    %153 = math.exp %152 : vector<8x128xf32>
    %cst_41 = arith.constant 1.000000e+00 : f32
    %154 = vector.broadcast %cst_41 : f32 to vector<8x128xf32>
    %155 = arith.addf %154, %153 : vector<8x128xf32>
    %156 = arith.divf %154, %155 : vector<8x128xf32>
    %157 = vector.extract_strided_slice %144 {offsets = [0, 256], sizes = [8, 128], strides = [1, 1]} : vector<8x512xf32> to vector<8x128xf32>
    %158 = math.tanh %157 : vector<8x128xf32>
    %159 = vector.extract_strided_slice %144 {offsets = [0, 384], sizes = [8, 128], strides = [1, 1]} : vector<8x512xf32> to vector<8x128xf32>
    %160 = arith.negf %159 : vector<8x128xf32>
    %161 = math.exp %160 : vector<8x128xf32>
    %cst_42 = arith.constant 1.000000e+00 : f32
    %162 = vector.broadcast %cst_42 : f32 to vector<8x128xf32>
    %163 = arith.addf %162, %161 : vector<8x128xf32>
    %164 = arith.divf %162, %163 : vector<8x128xf32>
    %165 = arith.mulf %156, %136 : vector<8x128xf32>
    %166 = arith.mulf %150, %158 : vector<8x128xf32>
    %167 = arith.addf %165, %166 : vector<8x128xf32>
    %168 = math.tanh %167 : vector<8x128xf32>
    %169 = arith.mulf %164, %168 : vector<8x128xf32>
    %c5_i32 = arith.constant 5 : i32
    %170 = arith.index_cast %c5_i32 : i32 to index
    %c0_43 = arith.constant 0 : index
    %c0_44 = arith.constant 0 : index
    %171 = vector.load %arg8[%170, %c0_43, %c0_44] : memref<8x8x512xf32, #tpu.memory_space<vmem>>, vector<1x8x512xf32>
    %172 = vector.shape_cast %171 : vector<1x8x512xf32> to vector<8x512xf32>
    %173 = arith.truncf %169 : vector<8x128xf32> to vector<8x128xbf16>
    %cst_45 = arith.constant dense<0.000000e+00> : vector<8x512xf32>
    %174 = tpu.matmul %173, %12, %cst_45 {dimension_numbers = #tpu.dot_dimension_numbers<[1], [0], [0], [1], [0, 0, 1, 1], [], []>} : vector<8x128xbf16>, vector<128x512xbf16>, vector<8x512xf32> -> vector<8x512xf32>
    %175 = arith.addf %172, %174 : vector<8x512xf32>
    %176 = vector.extract_strided_slice %175 {offsets = [0, 0], sizes = [8, 128], strides = [1, 1]} : vector<8x512xf32> to vector<8x128xf32>
    %177 = arith.negf %176 : vector<8x128xf32>
    %178 = math.exp %177 : vector<8x128xf32>
    %cst_46 = arith.constant 1.000000e+00 : f32
    %179 = vector.broadcast %cst_46 : f32 to vector<8x128xf32>
    %180 = arith.addf %179, %178 : vector<8x128xf32>
    %181 = arith.divf %179, %180 : vector<8x128xf32>
    %182 = vector.extract_strided_slice %175 {offsets = [0, 128], sizes = [8, 128], strides = [1, 1]} : vector<8x512xf32> to vector<8x128xf32>
    %183 = arith.negf %182 : vector<8x128xf32>
    %184 = math.exp %183 : vector<8x128xf32>
    %cst_47 = arith.constant 1.000000e+00 : f32
    %185 = vector.broadcast %cst_47 : f32 to vector<8x128xf32>
    %186 = arith.addf %185, %184 : vector<8x128xf32>
    %187 = arith.divf %185, %186 : vector<8x128xf32>
    %188 = vector.extract_strided_slice %175 {offsets = [0, 256], sizes = [8, 128], strides = [1, 1]} : vector<8x512xf32> to vector<8x128xf32>
    %189 = math.tanh %188 : vector<8x128xf32>
    %190 = vector.extract_strided_slice %175 {offsets = [0, 384], sizes = [8, 128], strides = [1, 1]} : vector<8x512xf32> to vector<8x128xf32>
    %191 = arith.negf %190 : vector<8x128xf32>
    %192 = math.exp %191 : vector<8x128xf32>
    %cst_48 = arith.constant 1.000000e+00 : f32
    %193 = vector.broadcast %cst_48 : f32 to vector<8x128xf32>
    %194 = arith.addf %193, %192 : vector<8x128xf32>
    %195 = arith.divf %193, %194 : vector<8x128xf32>
    %196 = arith.mulf %187, %167 : vector<8x128xf32>
    %197 = arith.mulf %181, %189 : vector<8x128xf32>
    %198 = arith.addf %196, %197 : vector<8x128xf32>
    %199 = math.tanh %198 : vector<8x128xf32>
    %200 = arith.mulf %195, %199 : vector<8x128xf32>
    %c6_i32 = arith.constant 6 : i32
    %201 = arith.index_cast %c6_i32 : i32 to index
    %c0_49 = arith.constant 0 : index
    %c0_50 = arith.constant 0 : index
    %202 = vector.load %arg8[%201, %c0_49, %c0_50] : memref<8x8x512xf32, #tpu.memory_space<vmem>>, vector<1x8x512xf32>
    %203 = vector.shape_cast %202 : vector<1x8x512xf32> to vector<8x512xf32>
    %204 = arith.truncf %200 : vector<8x128xf32> to vector<8x128xbf16>
    %cst_51 = arith.constant dense<0.000000e+00> : vector<8x512xf32>
    %205 = tpu.matmul %204, %12, %cst_51 {dimension_numbers = #tpu.dot_dimension_numbers<[1], [0], [0], [1], [0, 0, 1, 1], [], []>} : vector<8x128xbf16>, vector<128x512xbf16>, vector<8x512xf32> -> vector<8x512xf32>
    %206 = arith.addf %203, %205 : vector<8x512xf32>
    %207 = vector.extract_strided_slice %206 {offsets = [0, 0], sizes = [8, 128], strides = [1, 1]} : vector<8x512xf32> to vector<8x128xf32>
    %208 = arith.negf %207 : vector<8x128xf32>
    %209 = math.exp %208 : vector<8x128xf32>
    %cst_52 = arith.constant 1.000000e+00 : f32
    %210 = vector.broadcast %cst_52 : f32 to vector<8x128xf32>
    %211 = arith.addf %210, %209 : vector<8x128xf32>
    %212 = arith.divf %210, %211 : vector<8x128xf32>
    %213 = vector.extract_strided_slice %206 {offsets = [0, 128], sizes = [8, 128], strides = [1, 1]} : vector<8x512xf32> to vector<8x128xf32>
    %214 = arith.negf %213 : vector<8x128xf32>
    %215 = math.exp %214 : vector<8x128xf32>
    %cst_53 = arith.constant 1.000000e+00 : f32
    %216 = vector.broadcast %cst_53 : f32 to vector<8x128xf32>
    %217 = arith.addf %216, %215 : vector<8x128xf32>
    %218 = arith.divf %216, %217 : vector<8x128xf32>
    %219 = vector.extract_strided_slice %206 {offsets = [0, 256], sizes = [8, 128], strides = [1, 1]} : vector<8x512xf32> to vector<8x128xf32>
    %220 = math.tanh %219 : vector<8x128xf32>
    %221 = vector.extract_strided_slice %206 {offsets = [0, 384], sizes = [8, 128], strides = [1, 1]} : vector<8x512xf32> to vector<8x128xf32>
    %222 = arith.negf %221 : vector<8x128xf32>
    %223 = math.exp %222 : vector<8x128xf32>
    %cst_54 = arith.constant 1.000000e+00 : f32
    %224 = vector.broadcast %cst_54 : f32 to vector<8x128xf32>
    %225 = arith.addf %224, %223 : vector<8x128xf32>
    %226 = arith.divf %224, %225 : vector<8x128xf32>
    %227 = arith.mulf %218, %198 : vector<8x128xf32>
    %228 = arith.mulf %212, %220 : vector<8x128xf32>
    %229 = arith.addf %227, %228 : vector<8x128xf32>
    %230 = math.tanh %229 : vector<8x128xf32>
    %231 = arith.mulf %226, %230 : vector<8x128xf32>
    %c7_i32 = arith.constant 7 : i32
    %232 = arith.index_cast %c7_i32 : i32 to index
    %c0_55 = arith.constant 0 : index
    %c0_56 = arith.constant 0 : index
    %233 = vector.load %arg8[%232, %c0_55, %c0_56] : memref<8x8x512xf32, #tpu.memory_space<vmem>>, vector<1x8x512xf32>
    %234 = vector.shape_cast %233 : vector<1x8x512xf32> to vector<8x512xf32>
    %235 = arith.truncf %231 : vector<8x128xf32> to vector<8x128xbf16>
    %cst_57 = arith.constant dense<0.000000e+00> : vector<8x512xf32>
    %236 = tpu.matmul %235, %12, %cst_57 {dimension_numbers = #tpu.dot_dimension_numbers<[1], [0], [0], [1], [0, 0, 1, 1], [], []>} : vector<8x128xbf16>, vector<128x512xbf16>, vector<8x512xf32> -> vector<8x512xf32>
    %237 = arith.addf %234, %236 : vector<8x512xf32>
    %238 = vector.extract_strided_slice %237 {offsets = [0, 0], sizes = [8, 128], strides = [1, 1]} : vector<8x512xf32> to vector<8x128xf32>
    %239 = arith.negf %238 : vector<8x128xf32>
    %240 = math.exp %239 : vector<8x128xf32>
    %cst_58 = arith.constant 1.000000e+00 : f32
    %241 = vector.broadcast %cst_58 : f32 to vector<8x128xf32>
    %242 = arith.addf %241, %240 : vector<8x128xf32>
    %243 = arith.divf %241, %242 : vector<8x128xf32>
    %244 = vector.extract_strided_slice %237 {offsets = [0, 128], sizes = [8, 128], strides = [1, 1]} : vector<8x512xf32> to vector<8x128xf32>
    %245 = arith.negf %244 : vector<8x128xf32>
    %246 = math.exp %245 : vector<8x128xf32>
    %cst_59 = arith.constant 1.000000e+00 : f32
    %247 = vector.broadcast %cst_59 : f32 to vector<8x128xf32>
    %248 = arith.addf %247, %246 : vector<8x128xf32>
    %249 = arith.divf %247, %248 : vector<8x128xf32>
    %250 = vector.extract_strided_slice %237 {offsets = [0, 256], sizes = [8, 128], strides = [1, 1]} : vector<8x512xf32> to vector<8x128xf32>
    %251 = math.tanh %250 : vector<8x128xf32>
    %252 = vector.extract_strided_slice %237 {offsets = [0, 384], sizes = [8, 128], strides = [1, 1]} : vector<8x512xf32> to vector<8x128xf32>
    %253 = arith.negf %252 : vector<8x128xf32>
    %254 = math.exp %253 : vector<8x128xf32>
    %cst_60 = arith.constant 1.000000e+00 : f32
    %255 = vector.broadcast %cst_60 : f32 to vector<8x128xf32>
    %256 = arith.addf %255, %254 : vector<8x128xf32>
    %257 = arith.divf %255, %256 : vector<8x128xf32>
    %258 = arith.mulf %249, %229 : vector<8x128xf32>
    %259 = arith.mulf %243, %251 : vector<8x128xf32>
    %260 = arith.addf %258, %259 : vector<8x128xf32>
    %261 = math.tanh %260 : vector<8x128xf32>
    %262 = arith.mulf %257, %261 : vector<8x128xf32>
    %c8_i32 = arith.constant 8 : i32
    %263 = arith.truncf %262 : vector<8x128xf32> to vector<8x128xbf16>
    %c0_61 = arith.constant 0 : index
    %c0_62 = arith.constant 0 : index
    %264 = vector.load %arg5[%c0_61, %c0_62] : memref<128x128xf32, #tpu.memory_space<vmem>>, vector<128x128xf32>
    %265 = arith.truncf %264 : vector<128x128xf32> to vector<128x128xbf16>
    %cst_63 = arith.constant dense<0.000000e+00> : vector<8x128xf32>
    %266 = tpu.matmul %263, %265, %cst_63 {dimension_numbers = #tpu.dot_dimension_numbers<[1], [0], [0], [1], [0, 0, 1, 1], [], []>} : vector<8x128xbf16>, vector<128x128xbf16>, vector<8x128xf32> -> vector<8x128xf32>
    %c0_64 = arith.constant 0 : index
    %c0_65 = arith.constant 0 : index
    %267 = vector.load %arg6[%c0_64, %c0_65] : memref<1x128xf32, #tpu.memory_space<vmem>>, vector<1x128xf32>
    %268 = vector.broadcast %267 : vector<1x128xf32> to vector<8x128xf32>
    %269 = arith.addf %266, %268 : vector<8x128xf32>
    %c0_66 = arith.constant 0 : index
    %c0_67 = arith.constant 0 : index
    %270 = vector.load %arg7[%c0_66, %c0_67] : memref<8x128xf32, #tpu.memory_space<vmem>>, vector<8x128xf32>
    tpu.vector_store %arg7[%c0_66, %c0_67], %269 {strides = array<i32>} : memref<8x128xf32, #tpu.memory_space<vmem>>, vector<8x128xf32>,
    return
  }
  func.func @transform_0(%arg0: i32) -> (i32, i32, i32) {
    %c0_i32 = arith.constant 0 : i32
    %c0_i32_0 = arith.constant 0 : i32
    %c0_i32_1 = arith.constant 0 : i32
    return %c0_i32, %arg0, %c0_i32_0 : i32, i32, i32
  }
  func.func @transform_1(%arg0: i32) -> (i32, i32) {
    %c0_i32 = arith.constant 0 : i32
    %c0_i32_0 = arith.constant 0 : i32
    %c0_i32_1 = arith.constant 0 : i32
    return %c0_i32, %c0_i32_0 : i32, i32
  }
  func.func @transform_2(%arg0: i32) -> (i32, i32) {
    %c0_i32 = arith.constant 0 : i32
    %c0_i32_0 = arith.constant 0 : i32
    %c0_i32_1 = arith.constant 0 : i32
    return %c0_i32, %c0_i32_0 : i32, i32
  }
  func.func @transform_3(%arg0: i32) -> (i32, i32) {
    %c0_i32 = arith.constant 0 : i32
    %c0_i32_0 = arith.constant 0 : i32
    %c0_i32_1 = arith.constant 0 : i32
    return %c0_i32, %c0_i32_0 : i32, i32
  }
  func.func @transform_4(%arg0: i32) -> (i32, i32) {
    %c0_i32 = arith.constant 0 : i32
    %c0_i32_0 = arith.constant 0 : i32
    %c0_i32_1 = arith.constant 0 : i32
    return %c0_i32, %c0_i32_0 : i32, i32
  }
  func.func @transform_5(%arg0: i32) -> (i32, i32) {
    %c0_i32 = arith.constant 0 : i32
    %c0_i32_0 = arith.constant 0 : i32
    %c0_i32_1 = arith.constant 0 : i32
    return %c0_i32, %c0_i32_0 : i32, i32
  }
  func.func @transform_6(%arg0: i32) -> (i32, i32) {
    %c0_i32 = arith.constant 0 : i32
    %c0_i32_0 = arith.constant 0 : i32
    return %arg0, %c0_i32 : i32, i32
  }
}

</mosaic_0001>

<llo_original>
// kernel: tpu_custom_call.1
$region0: #{tpu_custom_call.1}
  #allocation0 [shape = 'u32[]', space=smem, size = 0x4, offset = 0x4, fixed_abs, tag = 'smem constant byte address 0x4 - core index']
  #allocation1 [shape = 'u32[144,128]{1,0:T(1,128)}', space=vmem, size = 0x12000, scoped, tag = 'internal scratch']
  #allocation2 [shape = 'f32[8,8,512]{2,1,0:T(8,128)}', space=vmem, size = 0x20000, scoped, tag = 'scratch operand']
  %s0 = inlined_call_operand.hbm [shape: f32[8,8,128], index: 0, kind: input, shape index: {}]
  %s1 = inlined_call_operand.hbm [shape: f32[128,512], index: 1, kind: input, shape index: {}]
  %s2 = inlined_call_operand.hbm [shape: f32[128,512], index: 2, kind: input, shape index: {}]
  %s3 = inlined_call_operand.vmem [shape: f32[1,512], index: 3, kind: input, shape index: {}]
  %s4 = inlined_call_operand.hbm [shape: f32[128,128], index: 4, kind: input, shape index: {}]
  %s5 = inlined_call_operand.vmem [shape: f32[1,128], index: 5, kind: input, shape index: {}]
  %s6 = inlined_call_operand.hbm [shape: f32[8,128], index: 6, kind: output, shape index: {}]
  %s7 = sld [smem:[#allocation0]]
  $region50: #{tpu_custom_call.1} parent=0
    _
  %s9 = ssub.s32 1, %s7
  %s10 = scalar_select 0, %s9, %s7
  $region1: #{tpu_custom_call.1} parent=0
    #allocation3 [shape = 'u8[32768]{0}', space=vmem, size = 0x8000, scoped, tag = 'input window, operand 0, single buffered']
    #allocation4 [shape = 's32[1]{0}', space=sflag, size = 0x4, scoped, tag = 'scoped memory for tpu_custom_call.1']
    #allocation5 [shape = 's32[1]{0}', space=sflag, size = 0x4, scoped, tag = 'scoped memory for tpu_custom_call.1']
    #allocation6 [shape = 'u8[262144]{0}', space=vmem, size = 0x40000, scoped, tag = 'input window, operand 1, single buffered']
    #allocation7 [shape = 's32[1]{0}', space=sflag, size = 0x4, scoped, tag = 'scoped memory for tpu_custom_call.1']
    #allocation8 [shape = 'u8[262144]{0}', space=vmem, size = 0x40000, scoped, tag = 'input window, operand 2, single buffered']
    #allocation9 [shape = 'u8[65536]{0}', space=vmem, size = 0x10000, scoped, tag = 'input window, operand 4, single buffered']
    #allocation10 [shape = 's32[1]{0}', space=sflag, size = 0x4, scoped, tag = 'scoped memory for tpu_custom_call.1']
    #allocation11 [shape = 'u8[4096]{0}', space=vmem, size = 0x1000, scoped, tag = 'output window, operand 0, single buffered']
    %11 = vsyncpa [#allocation4], 0
    %12 = vsyncpa [#allocation7], 0
    %13 = vsyncpa [#allocation10], 0
    %14 = vsyncpa [#allocation5], 0
    // Predicated region
    $region2: #{tpu_custom_call.1} parent=1 // pred_check
      _
    $region3: #{tpu_custom_call.1} parent=1 // pred_check_branch
      %16 = sbr.rel (0) target = $region5
    $region4: #{tpu_custom_call.1} parent=1 // pred_region
      %s18 = ssub.s32 1024, 1024
      %19 = vsyncadd [#allocation4], %s18
      %s20 = sshll.u32 [#allocation3], 4
      %s21 = int_to_ptr.vmem [resolvable:$true] %s20
      %26 = dma.hbm_to_vmem [thread:$0]  %s0, 1024, %s21, [#allocation4], 128, 128, 8
    $region5: #{tpu_custom_call.1} parent=1 // pred_fallthru
      _
    // Predicated region
    $region6: #{tpu_custom_call.1} parent=1 // pred_check
      _
    $region7: #{tpu_custom_call.1} parent=1 // pred_check_branch
      %28 = sbr.rel (0) target = $region9
    $region8: #{tpu_custom_call.1} parent=1 // pred_region
      %s30 = ssub.s32 8192, 8192
      %31 = vsyncadd [#allocation7], %s30
      %s32 = sshll.u32 [#allocation6], 4
      %s33 = int_to_ptr.vmem [resolvable:$true] %s32
      %38 = dma.hbm_to_vmem [thread:$0]  %s1, 8192, %s33, [#allocation7], 512, 512, 32
    $region9: #{tpu_custom_call.1} parent=1 // pred_fallthru
      _
    // Predicated region
    $region10: #{tpu_custom_call.1} parent=1 // pred_check
      _
    $region11: #{tpu_custom_call.1} parent=1 // pred_check_branch
      %40 = sbr.rel (0) target = $region13
    $region12: #{tpu_custom_call.1} parent=1 // pred_region
      %s42 = ssub.s32 8192, 8192
      %43 = vsyncadd [#allocation7], %s42
      %s44 = sshll.u32 [#allocation8], 4
      %s45 = int_to_ptr.vmem [resolvable:$true] %s44
      %50 = dma.hbm_to_vmem [thread:$0]  %s2, 8192, %s45, [#allocation7], 512, 512, 32
    $region13: #{tpu_custom_call.1} parent=1 // pred_fallthru
      _
    // Predicated region
    $region14: #{tpu_custom_call.1} parent=1 // pred_check
      _
    $region15: #{tpu_custom_call.1} parent=1 // pred_check_branch
      %52 = sbr.rel (0) target = $region17
    $region16: #{tpu_custom_call.1} parent=1 // pred_region
      _
    $region17: #{tpu_custom_call.1} parent=1 // pred_fallthru
      _
    // Predicated region
    $region18: #{tpu_custom_call.1} parent=1 // pred_check
      _
    $region19: #{tpu_custom_call.1} parent=1 // pred_check_branch
      %54 = sbr.rel (0) target = $region21
    $region20: #{tpu_custom_call.1} parent=1 // pred_region
      %s56 = ssub.s32 2048, 2048
      %57 = vsyncadd [#allocation10], %s56
      %s58 = sshll.u32 [#allocation9], 4
      %s59 = int_to_ptr.vmem [resolvable:$true] %s58
      %64 = dma.hbm_to_vmem [thread:$0]  %s4, 2048, %s59, [#allocation10], 128, 128, 8
    $region21: #{tpu_custom_call.1} parent=1 // pred_fallthru
      _
    // Predicated region
    $region22: #{tpu_custom_call.1} parent=1 // pred_check
      _
    $region23: #{tpu_custom_call.1} parent=1 // pred_check_branch
      %66 = sbr.rel (0) target = $region25
    $region24: #{tpu_custom_call.1} parent=1 // pred_region
      _
    $region25: #{tpu_custom_call.1} parent=1 // pred_fallthru
      _
    // Predicated region
    $region26: #{tpu_custom_call.1} parent=1 // pred_check
      _
    $region27: #{tpu_custom_call.1} parent=1 // pred_check_branch
      %68 = sbr.rel (0) target = $region29
    $region28: #{tpu_custom_call.1} parent=1 // pred_region
      %69 = dma.done [#allocation4], 1024
    $region29: #{tpu_custom_call.1} parent=1 // pred_fallthru
      _
    // Predicated region
    $region30: #{tpu_custom_call.1} parent=1 // pred_check
      _
    $region31: #{tpu_custom_call.1} parent=1 // pred_check_branch
      %71 = sbr.rel (0) target = $region33
    $region32: #{tpu_custom_call.1} parent=1 // pred_region
      %72 = dma.done [#allocation7], 8192
    $region33: #{tpu_custom_call.1} parent=1 // pred_fallthru
      _
    // Predicated region
    $region34: #{tpu_custom_call.1} parent=1 // pred_check
      _
    $region35: #{tpu_custom_call.1} parent=1 // pred_check_branch
      %74 = sbr.rel (0) target = $region37
    $region36: #{tpu_custom_call.1} parent=1 // pred_region
      %75 = dma.done [#allocation7], 8192
    $region37: #{tpu_custom_call.1} parent=1 // pred_fallthru
      _
    // Predicated region
    $region38: #{tpu_custom_call.1} parent=1 // pred_check
      _
    $region39: #{tpu_custom_call.1} parent=1 // pred_check_branch
      %77 = sbr.rel (0) target = $region41
    $region40: #{tpu_custom_call.1} parent=1 // pred_region
      %78 = dma.done [#allocation10], 2048
    $region41: #{tpu_custom_call.1} parent=1 // pred_fallthru
      _
    %v80 = vld [vmem:[#allocation3] sm:$0xff]
    %v81 = vld [vmem:[#allocation3 + $0x8] sm:$0xff]
    %v82 = vld [vmem:[#allocation3 + $0x10] sm:$0xff]
    %v83 = vld [vmem:[#allocation3 + $0x18] sm:$0xff]
    %v84 = vld [vmem:[#allocation3 + $0x20] sm:$0xff]
    %v85 = vld [vmem:[#allocation3 + $0x28] sm:$0xff]
    %v86 = vld [vmem:[#allocation3 + $0x30] sm:$0xff]
    %v87 = vld [vmem:[#allocation3 + $0x38] sm:$0xff]
    %v88 = vpack.c.bf16 %v81, %v80
    %v89 = vpack.c.bf16 %v83, %v82
    %v90 = vpack.c.bf16 %v85, %v84
    %v91 = vpack.c.bf16 %v87, %v86
    %v92 = vld [vmem:[#allocation6] sm:$0xff]
    %v93 = vld [vmem:[#allocation6 + $0x8] sm:$0xff]
    %v94 = vld [vmem:[#allocation6 + $0x10] sm:$0xff]
    %v95 = vld [vmem:[#allocation6 + $0x18] sm:$0xff]
    %v96 = vld [vmem:[#allocation6 + $0x20] sm:$0xff]
    %v97 = vld [vmem:[#allocation6 + $0x28] sm:$0xff]
    %v98 = vld [vmem:[#allocation6 + $0x30] sm:$0xff]
    %v99 = vld [vmem:[#allocation6 + $0x38] sm:$0xff]
    %v100 = vld [vmem:[#allocation6 + $0x40] sm:$0xff]
    %v101 = vld [vmem:[#allocation6 + $0x48] sm:$0xff]
    %v102 = vld [vmem:[#allocation6 + $0x50] sm:$0xff]
    %v103 = vld [vmem:[#allocation6 + $0x58] sm:$0xff]
    %v104 = vld [vmem:[#allocation6 + $0x60] sm:$0xff]
    %v105 = vld [vmem:[#allocation6 + $0x68] sm:$0xff]
    %v106 = vld [vmem:[#allocation6 + $0x70] sm:$0xff]
    %v107 = vld [vmem:[#allocation6 + $0x78] sm:$0xff]
    %v108 = vld [vmem:[#allocation6 + $0x80] sm:$0xff]
    %v109 = vld [vmem:[#allocation6 + $0x88] sm:$0xff]
    %v110 = vld [vmem:[#allocation6 + $0x90] sm:$0xff]
    %v111 = vld [vmem:[#allocation6 + $0x98] sm:$0xff]
    %v112 = vld [vmem:[#allocation6 + $0xa0] sm:$0xff]
    %v113 = vld [vmem:[#allocation6 + $0xa8] sm:$0xff]
    %v114 = vld [vmem:[#allocation6 + $0xb0] sm:$0xff]
    %v115 = vld [vmem:[#allocation6 + $0xb8] sm:$0xff]
    %v116 = vld [vmem:[#allocation6 + $0xc0] sm:$0xff]
    %v117 = vld [vmem:[#allocation6 + $0xc8] sm:$0xff]
    %v118 = vld [vmem:[#allocation6 + $0xd0] sm:$0xff]
    %v119 = vld [vmem:[#allocation6 + $0xd8] sm:$0xff]
    %v120 = vld [vmem:[#allocation6 + $0xe0] sm:$0xff]
    %v121 = vld [vmem:[#allocation6 + $0xe8] sm:$0xff]
    %v122 = vld [vmem:[#allocation6 + $0xf0] sm:$0xff]
    %v123 = vld [vmem:[#allocation6 + $0xf8] sm:$0xff]
    %v124 = vld [vmem:[#allocation6 + $0x100] sm:$0xff]
    %v125 = vld [vmem:[#allocation6 + $0x108] sm:$0xff]
    %v126 = vld [vmem:[#allocation6 + $0x110] sm:$0xff]
    %v127 = vld [vmem:[#allocation6 + $0x118] sm:$0xff]
    %v128 = vld [vmem:[#allocation6 + $0x120] sm:$0xff]
    %v129 = vld [vmem:[#allocation6 + $0x128] sm:$0xff]
    %v130 = vld [vmem:[#allocation6 + $0x130] sm:$0xff]
    %v131 = vld [vmem:[#allocation6 + $0x138] sm:$0xff]
    %v132 = vld [vmem:[#allocation6 + $0x140] sm:$0xff]
    %v133 = vld [vmem:[#allocation6 + $0x148] sm:$0xff]
    %v134 = vld [vmem:[#allocation6 + $0x150] sm:$0xff]
    %v135 = vld [vmem:[#allocation6 + $0x158] sm:$0xff]
    %v136 = vld [vmem:[#allocation6 + $0x160] sm:$0xff]
    %v137 = vld [vmem:[#allocation6 + $0x168] sm:$0xff]
    %v138 = vld [vmem:[#allocation6 + $0x170] sm:$0xff]
    %v139 = vld [vmem:[#allocation6 + $0x178] sm:$0xff]
    %v140 = vld [vmem:[#allocation6 + $0x180] sm:$0xff]
    %v141 = vld [vmem:[#allocation6 + $0x188] sm:$0xff]
    %v142 = vld [vmem:[#allocation6 + $0x190] sm:$0xff]
    %v143 = vld [vmem:[#allocation6 + $0x198] sm:$0xff]
    %v144 = vld [vmem:[#allocation6 + $0x1a0] sm:$0xff]
    %v145 = vld [vmem:[#allocation6 + $0x1a8] sm:$0xff]
    %v146 = vld [vmem:[#allocation6 + $0x1b0] sm:$0xff]
    %v147 = vld [vmem:[#allocation6 + $0x1b8] sm:$0xff]
    %v148 = vld [vmem:[#allocation6 + $0x1c0] sm:$0xff]
    %v149 = vld [vmem:[#allocation6 + $0x1c8] sm:$0xff]
    %v150 = vld [vmem:[#allocation6 + $0x1d0] sm:$0xff]
    %v151 = vld [vmem:[#allocation6 + $0x1d8] sm:$0xff]
    %v152 = vld [vmem:[#allocation6 + $0x1e0] sm:$0xff]
    %v153 = vld [vmem:[#allocation6 + $0x1e8] sm:$0xff]
    %v154 = vld [vmem:[#allocation6 + $0x1f0] sm:$0xff]
    %v155 = vld [vmem:[#allocation6 + $0x1f8] sm:$0xff]
    %v156 = vpack.c.bf16 %v96, %v92
    %v157 = vpack.c.bf16 %v97, %v93
    %v158 = vpack.c.bf16 %v98, %v94
    %v159 = vpack.c.bf16 %v99, %v95
    %v160 = vpack.c.bf16 %v104, %v100
    %v161 = vpack.c.bf16 %v105, %v101
    %v162 = vpack.c.bf16 %v106, %v102
    %v163 = vpack.c.bf16 %v107, %v103
    %v164 = vpack.c.bf16 %v112, %v108
    %v165 = vpack.c.bf16 %v113, %v109
    %v166 = vpack.c.bf16 %v114, %v110
    %v167 = vpack.c.bf16 %v115, %v111
    %v168 = vpack.c.bf16 %v120, %v116
    %v169 = vpack.c.bf16 %v121, %v117
    %v170 = vpack.c.bf16 %v122, %v118
    %v171 = vpack.c.bf16 %v123, %v119
    %v172 = vpack.c.bf16 %v128, %v124
    %v173 = vpack.c.bf16 %v129, %v125
    %v174 = vpack.c.bf16 %v130, %v126
    %v175 = vpack.c.bf16 %v131, %v127
    %v176 = vpack.c.bf16 %v136, %v132
    %v177 = vpack.c.bf16 %v137, %v133
    %v178 = vpack.c.bf16 %v138, %v134
    %v179 = vpack.c.bf16 %v139, %v135
    %v180 = vpack.c.bf16 %v144, %v140
    %v181 = vpack.c.bf16 %v145, %v141
    %v182 = vpack.c.bf16 %v146, %v142
    %v183 = vpack.c.bf16 %v147, %v143
    %v184 = vpack.c.bf16 %v152, %v148
    %v185 = vpack.c.bf16 %v153, %v149
    %v186 = vpack.c.bf16 %v154, %v150
    %v187 = vpack.c.bf16 %v155, %v151
    %v188 = vld [vmem:[%s3] sm:$0xf]
    %v190 = vlaneseq
    %v191 = vshrl.u32 %v190, 7
    %v192 = vsub.s32 0, %v191
    %v193 = vrot.slane %v188, %v192
    %v194 = vlaneseq
    %v195 = vshrl.u32 %v194, 7
    %v196 = vsub.s32 1, %v195
    %v197 = vrot.slane %v188, %v196
    %v198 = vlaneseq
    %v199 = vshrl.u32 %v198, 7
    %v200 = vsub.s32 2, %v199
    %v201 = vrot.slane %v188, %v200
    %v202 = vlaneseq
    %v203 = vshrl.u32 %v202, 7
    %v204 = vsub.s32 3, %v203
    %v205 = vrot.slane %v188, %v204
    %210 = vmatprep.subr.bf16.mxu0 %v185
    %211 = vmatpush1.bf16.msra.mxu0 %v184
    %212 = vmatprep.subr.bf16.mxu0 %v181
    %213 = vmatpush1.bf16.msra.mxu0 %v180
    %214 = vmatprep.subr.bf16.mxu0 %v177
    %215 = vmatpush1.bf16.msra.mxu0 %v176
    %216 = vmatprep.subr.bf16.mxu0 %v173
    %217 = vmatpush1.bf16.msra.mxu0 %v172
    %218 = vmatprep.subr.bf16.mxu0 %v169
    %219 = vmatpush1.bf16.msra.mxu0 %v168
    %220 = vmatprep.subr.bf16.mxu0 %v165
    %221 = vmatpush1.bf16.msra.mxu0 %v164
    %222 = vmatprep.subr.bf16.mxu0 %v161
    %223 = vmatpush1.bf16.msra.mxu0 %v160
    %224 = vmatprep.subr.bf16.mxu0 %v157
    %225 = vmatpush1.bf16.msra.mxu0 %v156
    %226 = vmatprep.subr.bf16.mxu0 0
    %227 = vmatpush2.bf16.msra.mxu0 0
    %228 = vmatprep.subr.bf16.mxu0 0
    %229 = vmatpush2.bf16.msra.mxu0 0
    %230 = vmatprep.subr.bf16.mxu0 0
    %231 = vmatpush2.bf16.msra.mxu0 0
    %232 = vmatprep.subr.bf16.mxu0 0
    %233 = vmatpush2.bf16.msra.mxu0 0
    %234 = vmatprep.subr.bf16.mxu0 0
    %235 = vmatpush2.bf16.msra.mxu0 0
    %236 = vmatprep.subr.bf16.mxu0 0
    %237 = vmatpush2.bf16.msra.mxu0 0
    %238 = vmatprep.subr.bf16.mxu0 0
    %239 = vmatpush2.bf16.msra.mxu0 0
    %240 = vmatprep.subr.bf16.mxu0 0
    %241 = vmatpush2.bf16.msra.mxu0 0
    %242 = vmatprep.mubr.bf16.mxu0 0
    %243 = vmatmul.mubr.bf16.gmra.mxu0 %v88
    %v244 = vpop.f32.mrf.mxu0
    %v245 = vadd.f32 %v193, %v244
    %v246 = vpop.f32.mrf.mxu0
    %v247 = vadd.f32 %v197, %v246
    %v248 = vpop.f32.mrf.mxu0
    %v249 = vadd.f32 %v193, %v248
    %v250 = vpop.f32.mrf.mxu0
    %v251 = vadd.f32 %v197, %v250
    %252 = vmatprep.mubr.bf16.mxu0 0
    %253 = vmatmul.mubr.bf16.gmra.mxu0 %v89
    %v254 = vpop.f32.mrf.mxu0
    %v255 = vadd.f32 %v193, %v254
    %v256 = vpop.f32.mrf.mxu0
    %v257 = vadd.f32 %v197, %v256
    %v258 = vpop.f32.mrf.mxu0
    %v259 = vadd.f32 %v193, %v258
    %v260 = vpop.f32.mrf.mxu0
    %v261 = vadd.f32 %v197, %v260
    %262 = vmatprep.mubr.bf16.mxu0 0
    %263 = vmatmul.mubr.bf16.gmra.mxu0 %v90
    %v264 = vpop.f32.mrf.mxu0
    %v265 = vadd.f32 %v193, %v264
    %v266 = vpop.f32.mrf.mxu0
    %v267 = vadd.f32 %v197, %v266
    %v268 = vpop.f32.mrf.mxu0
    %v269 = vadd.f32 %v193, %v268
    %v270 = vpop.f32.mrf.mxu0
    %v271 = vadd.f32 %v197, %v270
    %272 = vmatprep.mubr.bf16.mxu0 0
    %273 = vmatmul.mubr.bf16.gmra.mxu0 %v91
    %v274 = vpop.f32.mrf.mxu0
    %v275 = vadd.f32 %v193, %v274
    %v276 = vpop.f32.mrf.mxu0
    %v277 = vadd.f32 %v197, %v276
    %v278 = vpop.f32.mrf.mxu0
    %v279 = vadd.f32 %v193, %v278
    %v280 = vpop.f32.mrf.mxu0
    %v281 = vadd.f32 %v197, %v280
    %282 = vdwg.mxu0
    %283 = vmatprep.subr.bf16.mxu0 %v187
    %284 = vmatpush1.bf16.msra.mxu0 %v186
    %285 = vmatprep.subr.bf16.mxu0 %v183
    %286 = vmatpush1.bf16.msra.mxu0 %v182
    %287 = vmatprep.subr.bf16.mxu0 %v179
    %288 = vmatpush1.bf16.msra.mxu0 %v178
    %289 = vmatprep.subr.bf16.mxu0 %v175
    %290 = vmatpush1.bf16.msra.mxu0 %v174
    %291 = vmatprep.subr.bf16.mxu0 %v171
    %292 = vmatpush1.bf16.msra.mxu0 %v170
    %293 = vmatprep.subr.bf16.mxu0 %v167
    %294 = vmatpush1.bf16.msra.mxu0 %v166
    %295 = vmatprep.subr.bf16.mxu0 %v163
    %296 = vmatpush1.bf16.msra.mxu0 %v162
    %297 = vmatprep.subr.bf16.mxu0 %v159
    %298 = vmatpush1.bf16.msra.mxu0 %v158
    %299 = vmatprep.subr.bf16.mxu0 0
    %300 = vmatpush2.bf16.msra.mxu0 0
    %301 = vmatprep.subr.bf16.mxu0 0
    %302 = vmatpush2.bf16.msra.mxu0 0
    %303 = vmatprep.subr.bf16.mxu0 0
    %304 = vmatpush2.bf16.msra.mxu0 0
    %305 = vmatprep.subr.bf16.mxu0 0
    %306 = vmatpush2.bf16.msra.mxu0 0
    %307 = vmatprep.subr.bf16.mxu0 0
    %308 = vmatpush2.bf16.msra.mxu0 0
    %309 = vmatprep.subr.bf16.mxu0 0
    %310 = vmatpush2.bf16.msra.mxu0 0
    %311 = vmatprep.subr.bf16.mxu0 0
    %312 = vmatpush2.bf16.msra.mxu0 0
    %313 = vmatprep.subr.bf16.mxu0 0
    %314 = vmatpush2.bf16.msra.mxu0 0
    %315 = vmatprep.mubr.bf16.mxu0 0
    %316 = vmatmul.mubr.bf16.gmra.mxu0 %v88
    %v317 = vpop.f32.mrf.mxu0
    %v318 = vadd.f32 %v201, %v317
    %v319 = vpop.f32.mrf.mxu0
    %v320 = vadd.f32 %v205, %v319
    %v321 = vpop.f32.mrf.mxu0
    %v322 = vadd.f32 %v201, %v321
    %v323 = vpop.f32.mrf.mxu0
    %v324 = vadd.f32 %v205, %v323
    %325 = vmatprep.mubr.bf16.mxu0 0
    %326 = vmatmul.mubr.bf16.gmra.mxu0 %v89
    %v327 = vpop.f32.mrf.mxu0
    %v328 = vadd.f32 %v201, %v327
    %v329 = vpop.f32.mrf.mxu0
    %v330 = vadd.f32 %v205, %v329
    %v331 = vpop.f32.mrf.mxu0
    %v332 = vadd.f32 %v201, %v331
    %v333 = vpop.f32.mrf.mxu0
    %v334 = vadd.f32 %v205, %v333
    %335 = vmatprep.mubr.bf16.mxu0 0
    %336 = vmatmul.mubr.bf16.gmra.mxu0 %v90
    %v337 = vpop.f32.mrf.mxu0
    %v338 = vadd.f32 %v201, %v337
    %v339 = vpop.f32.mrf.mxu0
    %v340 = vadd.f32 %v205, %v339
    %v341 = vpop.f32.mrf.mxu0
    %v342 = vadd.f32 %v201, %v341
    %v343 = vpop.f32.mrf.mxu0
    %v344 = vadd.f32 %v205, %v343
    %345 = vmatprep.mubr.bf16.mxu0 0
    %346 = vmatmul.mubr.bf16.gmra.mxu0 %v91
    %v347 = vpop.f32.mrf.mxu0
    %v348 = vadd.f32 %v201, %v347
    %v349 = vpop.f32.mrf.mxu0
    %v350 = vadd.f32 %v205, %v349
    %v351 = vpop.f32.mrf.mxu0
    %v352 = vadd.f32 %v201, %v351
    %v353 = vpop.f32.mrf.mxu0
    %v354 = vadd.f32 %v205, %v353
    %355 = vdwg.mxu0
    %356 = vst [vmem:[#allocation2] sm:$0xff] %v245
    %357 = vst [vmem:[#allocation2 + $0x8] sm:$0xff] %v247
    %358 = vst [vmem:[#allocation2 + $0x10] sm:$0xff] %v318
    %359 = vst [vmem:[#allocation2 + $0x18] sm:$0xff] %v320
    %360 = vst [vmem:[#allocation2 + $0x20] sm:$0xff] %v249
    %361 = vst [vmem:[#allocation2 + $0x28] sm:$0xff] %v251
    %362 = vst [vmem:[#allocation2 + $0x30] sm:$0xff] %v322
    %363 = vst [vmem:[#allocation2 + $0x38] sm:$0xff] %v324
    %364 = vst [vmem:[#allocation2 + $0x40] sm:$0xff] %v255
    %365 = vst [vmem:[#allocation2 + $0x48] sm:$0xff] %v257
    %366 = vst [vmem:[#allocation2 + $0x50] sm:$0xff] %v328
    %367 = vst [vmem:[#allocation2 + $0x58] sm:$0xff] %v330
    %368 = vst [vmem:[#allocation2 + $0x60] sm:$0xff] %v259
    %369 = vst [vmem:[#allocation2 + $0x68] sm:$0xff] %v261
    %370 = vst [vmem:[#allocation2 + $0x70] sm:$0xff] %v332
    %371 = vst [vmem:[#allocation2 + $0x78] sm:$0xff] %v334
    %372 = vst [vmem:[#allocation2 + $0x80] sm:$0xff] %v265
    %373 = vst [vmem:[#allocation2 + $0x88] sm:$0xff] %v267
    %374 = vst [vmem:[#allocation2 + $0x90] sm:$0xff] %v338
    %375 = vst [vmem:[#allocation2 + $0x98] sm:$0xff] %v340
    %376 = vst [vmem:[#allocation2 + $0xa0] sm:$0xff] %v269
    %377 = vst [vmem:[#allocation2 + $0xa8] sm:$0xff] %v271
    %378 = vst [vmem:[#allocation2 + $0xb0] sm:$0xff] %v342
    %379 = vst [vmem:[#allocation2 + $0xb8] sm:$0xff] %v344
    %380 = vst [vmem:[#allocation2 + $0xc0] sm:$0xff] %v275
    %381 = vst [vmem:[#allocation2 + $0xc8] sm:$0xff] %v277
    %382 = vst [vmem:[#allocation2 + $0xd0] sm:$0xff] %v348
    %383 = vst [vmem:[#allocation2 + $0xd8] sm:$0xff] %v350
    %384 = vst [vmem:[#allocation2 + $0xe0] sm:$0xff] %v279
    %385 = vst [vmem:[#allocation2 + $0xe8] sm:$0xff] %v281
    %386 = vst [vmem:[#allocation2 + $0xf0] sm:$0xff] %v352
    %387 = vst [vmem:[#allocation2 + $0xf8] sm:$0xff] %v354
    %v388 = vld [vmem:[#allocation8] sm:$0xff]
    %v389 = vld [vmem:[#allocation8 + $0x8] sm:$0xff]
    %v390 = vld [vmem:[#allocation8 + $0x10] sm:$0xff]
    %v391 = vld [vmem:[#allocation8 + $0x18] sm:$0xff]
    %v392 = vld [vmem:[#allocation8 + $0x20] sm:$0xff]
    %v393 = vld [vmem:[#allocation8 + $0x28] sm:$0xff]
    %v394 = vld [vmem:[#allocation8 + $0x30] sm:$0xff]
    %v395 = vld [vmem:[#allocation8 + $0x38] sm:$0xff]
    %v396 = vld [vmem:[#allocation8 + $0x40] sm:$0xff]
    %v397 = vld [vmem:[#allocation8 + $0x48] sm:$0xff]
    %v398 = vld [vmem:[#allocation8 + $0x50] sm:$0xff]
    %v399 = vld [vmem:[#allocation8 + $0x58] sm:$0xff]
    %v400 = vld [vmem:[#allocation8 + $0x60] sm:$0xff]
    %v401 = vld [vmem:[#allocation8 + $0x68] sm:$0xff]
    %v402 = vld [vmem:[#allocation8 + $0x70] sm:$0xff]
    %v403 = vld [vmem:[#allocation8 + $0x78] sm:$0xff]
    %v404 = vld [vmem:[#allocation8 + $0x80] sm:$0xff]
    %v405 = vld [vmem:[#allocation8 + $0x88] sm:$0xff]
    %v406 = vld [vmem:[#allocation8 + $0x90] sm:$0xff]
    %v407 = vld [vmem:[#allocation8 + $0x98] sm:$0xff]
    %v408 = vld [vmem:[#allocation8 + $0xa0] sm:$0xff]
    %v409 = vld [vmem:[#allocation8 + $0xa8] sm:$0xff]
    %v410 = vld [vmem:[#allocation8 + $0xb0] sm:$0xff]
    %v411 = vld [vmem:[#allocation8 + $0xb8] sm:$0xff]
    %v412 = vld [vmem:[#allocation8 + $0xc0] sm:$0xff]
    %v413 = vld [vmem:[#allocation8 + $0xc8] sm:$0xff]
    %v414 = vld [vmem:[#allocation8 + $0xd0] sm:$0xff]
    %v415 = vld [vmem:[#allocation8 + $0xd8] sm:$0xff]
    %v416 = vld [vmem:[#allocation8 + $0xe0] sm:$0xff]
    %v417 = vld [vmem:[#allocation8 + $0xe8] sm:$0xff]
    %v418 = vld [vmem:[#allocation8 + $0xf0] sm:$0xff]
    %v419 = vld [vmem:[#allocation8 + $0xf8] sm:$0xff]
    %v420 = vld [vmem:[#allocation8 + $0x100] sm:$0xff]
    %v421 = vld [vmem:[#allocation8 + $0x108] sm:$0xff]
    %v422 = vld [vmem:[#allocation8 + $0x110] sm:$0xff]
    %v423 = vld [vmem:[#allocation8 + $0x118] sm:$0xff]
    %v424 = vld [vmem:[#allocation8 + $0x120] sm:$0xff]
    %v425 = vld [vmem:[#allocation8 + $0x128] sm:$0xff]
    %v426 = vld [vmem:[#allocation8 + $0x130] sm:$0xff]
    %v427 = vld [vmem:[#allocation8 + $0x138] sm:$0xff]
    %v428 = vld [vmem:[#allocation8 + $0x140] sm:$0xff]
    %v429 = vld [vmem:[#allocation8 + $0x148] sm:$0xff]
    %v430 = vld [vmem:[#allocation8 + $0x150] sm:$0xff]
    %v431 = vld [vmem:[#allocation8 + $0x158] sm:$0xff]
    %v432 = vld [vmem:[#allocation8 + $0x160] sm:$0xff]
    %v433 = vld [vmem:[#allocation8 + $0x168] sm:$0xff]
    %v434 = vld [vmem:[#allocation8 + $0x170] sm:$0xff]
    %v435 = vld [vmem:[#allocation8 + $0x178] sm:$0xff]
    %v436 = vld [vmem:[#allocation8 + $0x180] sm:$0xff]
    %v437 = vld [vmem:[#allocation8 + $0x188] sm:$0xff]
    %v438 = vld [vmem:[#allocation8 + $0x190] sm:$0xff]
    %v439 = vld [vmem:[#allocation8 + $0x198] sm:$0xff]
    %v440 = vld [vmem:[#allocation8 + $0x1a0] sm:$0xff]
    %v441 = vld [vmem:[#allocation8 + $0x1a8] sm:$0xff]
    %v442 = vld [vmem:[#allocation8 + $0x1b0] sm:$0xff]
    %v443 = vld [vmem:[#allocation8 + $0x1b8] sm:$0xff]
    %v444 = vld [vmem:[#allocation8 + $0x1c0] sm:$0xff]
    %v445 = vld [vmem:[#allocation8 + $0x1c8] sm:$0xff]
    %v446 = vld [vmem:[#allocation8 + $0x1d0] sm:$0xff]
    %v447 = vld [vmem:[#allocation8 + $0x1d8] sm:$0xff]
    %v448 = vld [vmem:[#allocation8 + $0x1e0] sm:$0xff]
    %v449 = vld [vmem:[#allocation8 + $0x1e8] sm:$0xff]
    %v450 = vld [vmem:[#allocation8 + $0x1f0] sm:$0xff]
    %v451 = vld [vmem:[#allocation8 + $0x1f8] sm:$0xff]
    %v452 = vpack.c.bf16 %v392, %v388
    %v453 = vpack.c.bf16 %v393, %v389
    %v454 = vpack.c.bf16 %v394, %v390
    %v455 = vpack.c.bf16 %v395, %v391
    %v456 = vpack.c.bf16 %v400, %v396
    %v457 = vpack.c.bf16 %v401, %v397
    %v458 = vpack.c.bf16 %v402, %v398
    %v459 = vpack.c.bf16 %v403, %v399
    %v460 = vpack.c.bf16 %v408, %v404
    %v461 = vpack.c.bf16 %v409, %v405
    %v462 = vpack.c.bf16 %v410, %v406
    %v463 = vpack.c.bf16 %v411, %v407
    %v464 = vpack.c.bf16 %v416, %v412
    %v465 = vpack.c.bf16 %v417, %v413
    %v466 = vpack.c.bf16 %v418, %v414
    %v467 = vpack.c.bf16 %v419, %v415
    %v468 = vpack.c.bf16 %v424, %v420
    %v469 = vpack.c.bf16 %v425, %v421
    %v470 = vpack.c.bf16 %v426, %v422
    %v471 = vpack.c.bf16 %v427, %v423
    %v472 = vpack.c.bf16 %v432, %v428
    %v473 = vpack.c.bf16 %v433, %v429
    %v474 = vpack.c.bf16 %v434, %v430
    %v475 = vpack.c.bf16 %v435, %v431
    %v476 = vpack.c.bf16 %v440, %v436
    %v477 = vpack.c.bf16 %v441, %v437
    %v478 = vpack.c.bf16 %v442, %v438
    %v479 = vpack.c.bf16 %v443, %v439
    %v480 = vpack.c.bf16 %v448, %v444
    %v481 = vpack.c.bf16 %v449, %v445
    %v482 = vpack.c.bf16 %v450, %v446
    %v483 = vpack.c.bf16 %v451, %v447
    %v484 = vld [vmem:[#allocation2] sm:$0xff]
    %v485 = vld [vmem:[#allocation2 + $0x8] sm:$0xff]
    %v486 = vld [vmem:[#allocation2 + $0x10] sm:$0xff]
    %v487 = vld [vmem:[#allocation2 + $0x18] sm:$0xff]
    %488 = vmatprep.subr.bf16.mxu0 %v481
    %489 = vmatpush1.bf16.msra.mxu0 %v480
    %490 = vmatprep.subr.bf16.mxu0 %v477
    %491 = vmatpush1.bf16.msra.mxu0 %v476
    %492 = vmatprep.subr.bf16.mxu0 %v473
    %493 = vmatpush1.bf16.msra.mxu0 %v472
    %494 = vmatprep.subr.bf16.mxu0 %v469
    %495 = vmatpush1.bf16.msra.mxu0 %v468
    %496 = vmatprep.subr.bf16.mxu0 %v465
    %497 = vmatpush1.bf16.msra.mxu0 %v464
    %498 = vmatprep.subr.bf16.mxu0 %v461
    %499 = vmatpush1.bf16.msra.mxu0 %v460
    %500 = vmatprep.subr.bf16.mxu0 %v457
    %501 = vmatpush1.bf16.msra.mxu0 %v456
    %502 = vmatprep.subr.bf16.mxu0 %v453
    %503 = vmatpush1.bf16.msra.mxu0 %v452
    %504 = vmatprep.subr.bf16.mxu0 0
    %505 = vmatpush2.bf16.msra.mxu0 0
    %506 = vmatprep.subr.bf16.mxu0 0
    %507 = vmatpush2.bf16.msra.mxu0 0
    %508 = vmatprep.subr.bf16.mxu0 0
    %509 = vmatpush2.bf16.msra.mxu0 0
    %510 = vmatprep.subr.bf16.mxu0 0
    %511 = vmatpush2.bf16.msra.mxu0 0
    %512 = vmatprep.subr.bf16.mxu0 0
    %513 = vmatpush2.bf16.msra.mxu0 0
    %514 = vmatprep.subr.bf16.mxu0 0
    %515 = vmatpush2.bf16.msra.mxu0 0
    %516 = vmatprep.subr.bf16.mxu0 0
    %517 = vmatpush2.bf16.msra.mxu0 0
    %518 = vmatprep.subr.bf16.mxu0 0
    %519 = vmatpush2.bf16.msra.mxu0 0
    %520 = vmatprep.mubr.bf16.mxu0 0
    %521 = vmatmul.mubr.bf16.gmra.mxu0 0
    %v522 = vpop.f32.mrf.mxu0
    %v523 = vadd.f32 0.0, %v522
    %v524 = vpop.f32.mrf.mxu0
    %v525 = vadd.f32 0.0, %v524
    %v526 = vpop.f32.mrf.mxu0
    %v527 = vpop.f32.mrf.mxu0
    %528 = vdwg.mxu0
    %529 = vmatprep.subr.bf16.mxu0 %v483
    %530 = vmatpush1.bf16.msra.mxu0 %v482
    %531 = vmatprep.subr.bf16.mxu0 %v479
    %532 = vmatpush1.bf16.msra.mxu0 %v478
    %533 = vmatprep.subr.bf16.mxu0 %v475
    %534 = vmatpush1.bf16.msra.mxu0 %v474
    %535 = vmatprep.subr.bf16.mxu0 %v471
    %536 = vmatpush1.bf16.msra.mxu0 %v470
    %537 = vmatprep.subr.bf16.mxu0 %v467
    %538 = vmatpush1.bf16.msra.mxu0 %v466
    %539 = vmatprep.subr.bf16.mxu0 %v463
    %540 = vmatpush1.bf16.msra.mxu0 %v462
    %541 = vmatprep.subr.bf16.mxu0 %v459
    %542 = vmatpush1.bf16.msra.mxu0 %v458
    %543 = vmatprep.subr.bf16.mxu0 %v455
    %544 = vmatpush1.bf16.msra.mxu0 %v454
    %545 = vmatprep.subr.bf16.mxu0 0
    %546 = vmatpush2.bf16.msra.mxu0 0
    %547 = vmatprep.subr.bf16.mxu0 0
    %548 = vmatpush2.bf16.msra.mxu0 0
    %549 = vmatprep.subr.bf16.mxu0 0
    %550 = vmatpush2.bf16.msra.mxu0 0
    %551 = vmatprep.subr.bf16.mxu0 0
    %552 = vmatpush2.bf16.msra.mxu0 0
    %553 = vmatprep.subr.bf16.mxu0 0
    %554 = vmatpush2.bf16.msra.mxu0 0
    %555 = vmatprep.subr.bf16.mxu0 0
    %556 = vmatpush2.bf16.msra.mxu0 0
    %557 = vmatprep.subr.bf16.mxu0 0
    %558 = vmatpush2.bf16.msra.mxu0 0
    %559 = vmatprep.subr.bf16.mxu0 0
    %560 = vmatpush2.bf16.msra.mxu0 0
    %561 = vmatprep.mubr.bf16.mxu0 0
    %562 = vmatmul.mubr.bf16.gmra.mxu0 0
    %v563 = vpop.f32.mrf.mxu0
    %v564 = vadd.f32 0.0, %v563
    %v565 = vpop.f32.mrf.mxu0
    %v566 = vadd.f32 0.0, %v565
    %v567 = vpop.f32.mrf.mxu0
    %v568 = vpop.f32.mrf.mxu0
    %569 = vdwg.mxu0
    %v570 = vadd.f32 %v484, %v523
    %v571 = vadd.f32 %v485, %v525
    %v572 = vadd.f32 %v486, %v564
    %v573 = vadd.f32 %v487, %v566
    %v574 = vxor.u32 %v570, 2147483648
    %v575 = vmul.f32 %v574, 1.442695
    %v576 = vpow.pop %v575
    %v577 = vadd.f32 %v576, 1.0
    %v578 = vrcp.pop %v577
    %v579 = vmul.f32 1.0, %v578
    %v580 = vxor.u32 %v571, 2147483648
    %v581 = vmul.f32 %v580, 1.442695
    %v582 = vpow.pop %v581
    %v583 = vadd.f32 %v582, 1.0
    %v584 = vrcp.pop %v583
    %v585 = vmul.f32 1.0, %v584
    %v586 = vtanh.pop %v572
    %v587 = vxor.u32 %v573, 2147483648
    %v588 = vmul.f32 %v587, 1.442695
    %v589 = vpow.pop %v588
    %v590 = vadd.f32 %v589, 1.0
    %v591 = vrcp.pop %v590
    %v592 = vmul.f32 1.0, %v591
    %v593 = vmul.f32 %v585, 0.0
    %v594 = vmul.f32 %v579, %v586
    %v595 = vadd.f32 %v593, %v594
    %v596 = vtanh.pop %v595
    %v597 = vmul.f32 %v592, %v596
    %s598 = scalar_lea.vmem [#allocation2], 32
    %v599 = vld [vmem:[%s598] sm:$0xff]
    %v600 = vld [vmem:[%s598 + $0x8] sm:$0xff]
    %v601 = vld [vmem:[%s598 + $0x10] sm:$0xff]
    %v602 = vld [vmem:[%s598 + $0x18] sm:$0xff]
    %v603 = vpack.c.bf16 %v597, %v597
    %604 = vmatprep.subr.bf16.mxu0 %v481
    %605 = vmatpush1.bf16.msra.mxu0 %v480
    %606 = vmatprep.subr.bf16.mxu0 %v477
    %607 = vmatpush1.bf16.msra.mxu0 %v476
    %608 = vmatprep.subr.bf16.mxu0 %v473
    %609 = vmatpush1.bf16.msra.mxu0 %v472
    %610 = vmatprep.subr.bf16.mxu0 %v469
    %611 = vmatpush1.bf16.msra.mxu0 %v468
    %612 = vmatprep.subr.bf16.mxu0 %v465
    %613 = vmatpush1.bf16.msra.mxu0 %v464
    %614 = vmatprep.subr.bf16.mxu0 %v461
    %615 = vmatpush1.bf16.msra.mxu0 %v460
    %616 = vmatprep.subr.bf16.mxu0 %v457
    %617 = vmatpush1.bf16.msra.mxu0 %v456
    %618 = vmatprep.subr.bf16.mxu0 %v453
    %619 = vmatpush1.bf16.msra.mxu0 %v452
    %620 = vmatprep.subr.bf16.mxu0 0
    %621 = vmatpush2.bf16.msra.mxu0 0
    %622 = vmatprep.subr.bf16.mxu0 0
    %623 = vmatpush2.bf16.msra.mxu0 0
    %624 = vmatprep.subr.bf16.mxu0 0
    %625 = vmatpush2.bf16.msra.mxu0 0
    %626 = vmatprep.subr.bf16.mxu0 0
    %627 = vmatpush2.bf16.msra.mxu0 0
    %628 = vmatprep.subr.bf16.mxu0 0
    %629 = vmatpush2.bf16.msra.mxu0 0
    %630 = vmatprep.subr.bf16.mxu0 0
    %631 = vmatpush2.bf16.msra.mxu0 0
    %632 = vmatprep.subr.bf16.mxu0 0
    %633 = vmatpush2.bf16.msra.mxu0 0
    %634 = vmatprep.subr.bf16.mxu0 0
    %635 = vmatpush2.bf16.msra.mxu0 0
    %636 = vmatprep.mubr.bf16.mxu0 0
    %637 = vmatmul.mubr.bf16.gmra.mxu0 %v603
    %v638 = vpop.f32.mrf.mxu0
    %v639 = vadd.f32 0.0, %v638
    %v640 = vpop.f32.mrf.mxu0
    %v641 = vadd.f32 0.0, %v640
    %v642 = vpop.f32.mrf.mxu0
    %v643 = vpop.f32.mrf.mxu0
    %644 = vdwg.mxu0
    %645 = vmatprep.subr.bf16.mxu0 %v483
    %646 = vmatpush1.bf16.msra.mxu0 %v482
    %647 = vmatprep.subr.bf16.mxu0 %v479
    %648 = vmatpush1.bf16.msra.mxu0 %v478
    %649 = vmatprep.subr.bf16.mxu0 %v475
    %650 = vmatpush1.bf16.msra.mxu0 %v474
    %651 = vmatprep.subr.bf16.mxu0 %v471
    %652 = vmatpush1.bf16.msra.mxu0 %v470
    %653 = vmatprep.subr.bf16.mxu0 %v467
    %654 = vmatpush1.bf16.msra.mxu0 %v466
    %655 = vmatprep.subr.bf16.mxu0 %v463
    %656 = vmatpush1.bf16.msra.mxu0 %v462
    %657 = vmatprep.subr.bf16.mxu0 %v459
    %658 = vmatpush1.bf16.msra.mxu0 %v458
    %659 = vmatprep.subr.bf16.mxu0 %v455
    %660 = vmatpush1.bf16.msra.mxu0 %v454
    %661 = vmatprep.subr.bf16.mxu0 0
    %662 = vmatpush2.bf16.msra.mxu0 0
    %663 = vmatprep.subr.bf16.mxu0 0
    %664 = vmatpush2.bf16.msra.mxu0 0
    %665 = vmatprep.subr.bf16.mxu0 0
    %666 = vmatpush2.bf16.msra.mxu0 0
    %667 = vmatprep.subr.bf16.mxu0 0
    %668 = vmatpush2.bf16.msra.mxu0 0
    %669 = vmatprep.subr.bf16.mxu0 0
    %670 = vmatpush2.bf16.msra.mxu0 0
    %671 = vmatprep.subr.bf16.mxu0 0
    %672 = vmatpush2.bf16.msra.mxu0 0
    %673 = vmatprep.subr.bf16.mxu0 0
    %674 = vmatpush2.bf16.msra.mxu0 0
    %675 = vmatprep.subr.bf16.mxu0 0
    %676 = vmatpush2.bf16.msra.mxu0 0
    %677 = vmatprep.mubr.bf16.mxu0 0
    %678 = vmatmul.mubr.bf16.gmra.mxu0 %v603
    %v679 = vpop.f32.mrf.mxu0
    %v680 = vadd.f32 0.0, %v679
    %v681 = vpop.f32.mrf.mxu0
    %v682 = vadd.f32 0.0, %v681
    %v683 = vpop.f32.mrf.mxu0
    %v684 = vpop.f32.mrf.mxu0
    %685 = vdwg.mxu0
    %v686 = vadd.f32 %v599, %v639
    %v687 = vadd.f32 %v600, %v641
    %v688 = vadd.f32 %v601, %v680
    %v689 = vadd.f32 %v602, %v682
    %v690 = vxor.u32 %v686, 2147483648
    %v691 = vmul.f32 %v690, 1.442695
    %v692 = vpow.pop %v691
    %v693 = vadd.f32 %v692, 1.0
    %v694 = vrcp.pop %v693
    %v695 = vmul.f32 1.0, %v694
    %v696 = vxor.u32 %v687, 2147483648
    %v697 = vmul.f32 %v696, 1.442695
    %v698 = vpow.pop %v697
    %v699 = vadd.f32 %v698, 1.0
    %v700 = vrcp.pop %v699
    %v701 = vmul.f32 1.0, %v700
    %v702 = vtanh.pop %v688
    %v703 = vxor.u32 %v689, 2147483648
    %v704 = vmul.f32 %v703, 1.442695
    %v705 = vpow.pop %v704
    %v706 = vadd.f32 %v705, 1.0
    %v707 = vrcp.pop %v706
    %v708 = vmul.f32 1.0, %v707
    %v709 = vmul.f32 %v701, %v595
    %v710 = vmul.f32 %v695, %v702
    %v711 = vadd.f32 %v709, %v710
    %v712 = vtanh.pop %v711
    %v713 = vmul.f32 %v708, %v712
    %s714 = scalar_lea.vmem [#allocation2], 64
    %v715 = vld [vmem:[%s714] sm:$0xff]
    %v716 = vld [vmem:[%s714 + $0x8] sm:$0xff]
    %v717 = vld [vmem:[%s714 + $0x10] sm:$0xff]
    %v718 = vld [vmem:[%s714 + $0x18] sm:$0xff]
    %v719 = vpack.c.bf16 %v713, %v713
    %720 = vmatprep.subr.bf16.mxu0 %v481
    %721 = vmatpush1.bf16.msra.mxu0 %v480
    %722 = vmatprep.subr.bf16.mxu0 %v477
    %723 = vmatpush1.bf16.msra.mxu0 %v476
    %724 = vmatprep.subr.bf16.mxu0 %v473
    %725 = vmatpush1.bf16.msra.mxu0 %v472
    %726 = vmatprep.subr.bf16.mxu0 %v469
    %727 = vmatpush1.bf16.msra.mxu0 %v468
    %728 = vmatprep.subr.bf16.mxu0 %v465
    %729 = vmatpush1.bf16.msra.mxu0 %v464
    %730 = vmatprep.subr.bf16.mxu0 %v461
    %731 = vmatpush1.bf16.msra.mxu0 %v460
    %732 = vmatprep.subr.bf16.mxu0 %v457
    %733 = vmatpush1.bf16.msra.mxu0 %v456
    %734 = vmatprep.subr.bf16.mxu0 %v453
    %735 = vmatpush1.bf16.msra.mxu0 %v452
    %736 = vmatprep.subr.bf16.mxu0 0
    %737 = vmatpush2.bf16.msra.mxu0 0
    %738 = vmatprep.subr.bf16.mxu0 0
    %739 = vmatpush2.bf16.msra.mxu0 0
    %740 = vmatprep.subr.bf16.mxu0 0
    %741 = vmatpush2.bf16.msra.mxu0 0
    %742 = vmatprep.subr.bf16.mxu0 0
    %743 = vmatpush2.bf16.msra.mxu0 0
    %744 = vmatprep.subr.bf16.mxu0 0
    %745 = vmatpush2.bf16.msra.mxu0 0
    %746 = vmatprep.subr.bf16.mxu0 0
    %747 = vmatpush2.bf16.msra.mxu0 0
    %748 = vmatprep.subr.bf16.mxu0 0
    %749 = vmatpush2.bf16.msra.mxu0 0
    %750 = vmatprep.subr.bf16.mxu0 0
    %751 = vmatpush2.bf16.msra.mxu0 0
    %752 = vmatprep.mubr.bf16.mxu0 0
    %753 = vmatmul.mubr.bf16.gmra.mxu0 %v719
    %v754 = vpop.f32.mrf.mxu0
    %v755 = vadd.f32 0.0, %v754
    %v756 = vpop.f32.mrf.mxu0
    %v757 = vadd.f32 0.0, %v756
    %v758 = vpop.f32.mrf.mxu0
    %v759 = vpop.f32.mrf.mxu0
    %760 = vdwg.mxu0
    %761 = vmatprep.subr.bf16.mxu0 %v483
    %762 = vmatpush1.bf16.msra.mxu0 %v482
    %763 = vmatprep.subr.bf16.mxu0 %v479
    %764 = vmatpush1.bf16.msra.mxu0 %v478
    %765 = vmatprep.subr.bf16.mxu0 %v475
    %766 = vmatpush1.bf16.msra.mxu0 %v474
    %767 = vmatprep.subr.bf16.mxu0 %v471
    %768 = vmatpush1.bf16.msra.mxu0 %v470
    %769 = vmatprep.subr.bf16.mxu0 %v467
    %770 = vmatpush1.bf16.msra.mxu0 %v466
    %771 = vmatprep.subr.bf16.mxu0 %v463
    %772 = vmatpush1.bf16.msra.mxu0 %v462
    %773 = vmatprep.subr.bf16.mxu0 %v459
    %774 = vmatpush1.bf16.msra.mxu0 %v458
    %775 = vmatprep.subr.bf16.mxu0 %v455
    %776 = vmatpush1.bf16.msra.mxu0 %v454
    %777 = vmatprep.subr.bf16.mxu0 0
    %778 = vmatpush2.bf16.msra.mxu0 0
    %779 = vmatprep.subr.bf16.mxu0 0
    %780 = vmatpush2.bf16.msra.mxu0 0
    %781 = vmatprep.subr.bf16.mxu0 0
    %782 = vmatpush2.bf16.msra.mxu0 0
    %783 = vmatprep.subr.bf16.mxu0 0
    %784 = vmatpush2.bf16.msra.mxu0 0
    %785 = vmatprep.subr.bf16.mxu0 0
    %786 = vmatpush2.bf16.msra.mxu0 0
    %787 = vmatprep.subr.bf16.mxu0 0
    %788 = vmatpush2.bf16.msra.mxu0 0
    %789 = vmatprep.subr.bf16.mxu0 0
    %790 = vmatpush2.bf16.msra.mxu0 0
    %791 = vmatprep.subr.bf16.mxu0 0
    %792 = vmatpush2.bf16.msra.mxu0 0
    %793 = vmatprep.mubr.bf16.mxu0 0
    %794 = vmatmul.mubr.bf16.gmra.mxu0 %v719
    %v795 = vpop.f32.mrf.mxu0
    %v796 = vadd.f32 0.0, %v795
    %v797 = vpop.f32.mrf.mxu0
    %v798 = vadd.f32 0.0, %v797
    %v799 = vpop.f32.mrf.mxu0
    %v800 = vpop.f32.mrf.mxu0
    %801 = vdwg.mxu0
    %v802 = vadd.f32 %v715, %v755
    %v803 = vadd.f32 %v716, %v757
    %v804 = vadd.f32 %v717, %v796
    %v805 = vadd.f32 %v718, %v798
    %v806 = vxor.u32 %v802, 2147483648
    %v807 = vmul.f32 %v806, 1.442695
    %v808 = vpow.pop %v807
    %v809 = vadd.f32 %v808, 1.0
    %v810 = vrcp.pop %v809
    %v811 = vmul.f32 1.0, %v810
    %v812 = vxor.u32 %v803, 2147483648
    %v813 = vmul.f32 %v812, 1.442695
    %v814 = vpow.pop %v813
    %v815 = vadd.f32 %v814, 1.0
    %v816 = vrcp.pop %v815
    %v817 = vmul.f32 1.0, %v816
    %v818 = vtanh.pop %v804
    %v819 = vxor.u32 %v805, 2147483648
    %v820 = vmul.f32 %v819, 1.442695
    %v821 = vpow.pop %v820
    %v822 = vadd.f32 %v821, 1.0
    %v823 = vrcp.pop %v822
    %v824 = vmul.f32 1.0, %v823
    %v825 = vmul.f32 %v817, %v711
    %v826 = vmul.f32 %v811, %v818
    %v827 = vadd.f32 %v825, %v826
    %v828 = vtanh.pop %v827
    %v829 = vmul.f32 %v824, %v828
    %s830 = scalar_lea.vmem [#allocation2], 96
    %v831 = vld [vmem:[%s830] sm:$0xff]
    %v832 = vld [vmem:[%s830 + $0x8] sm:$0xff]
    %v833 = vld [vmem:[%s830 + $0x10] sm:$0xff]
    %v834 = vld [vmem:[%s830 + $0x18] sm:$0xff]
    %v835 = vpack.c.bf16 %v829, %v829
    %836 = vmatprep.subr.bf16.mxu0 %v481
    %837 = vmatpush1.bf16.msra.mxu0 %v480
    %838 = vmatprep.subr.bf16.mxu0 %v477
    %839 = vmatpush1.bf16.msra.mxu0 %v476
    %840 = vmatprep.subr.bf16.mxu0 %v473
    %841 = vmatpush1.bf16.msra.mxu0 %v472
    %842 = vmatprep.subr.bf16.mxu0 %v469
    %843 = vmatpush1.bf16.msra.mxu0 %v468
    %844 = vmatprep.subr.bf16.mxu0 %v465
    %845 = vmatpush1.bf16.msra.mxu0 %v464
    %846 = vmatprep.subr.bf16.mxu0 %v461
    %847 = vmatpush1.bf16.msra.mxu0 %v460
    %848 = vmatprep.subr.bf16.mxu0 %v457
    %849 = vmatpush1.bf16.msra.mxu0 %v456
    %850 = vmatprep.subr.bf16.mxu0 %v453
    %851 = vmatpush1.bf16.msra.mxu0 %v452
    %852 = vmatprep.subr.bf16.mxu0 0
    %853 = vmatpush2.bf16.msra.mxu0 0
    %854 = vmatprep.subr.bf16.mxu0 0
    %855 = vmatpush2.bf16.msra.mxu0 0
    %856 = vmatprep.subr.bf16.mxu0 0
    %857 = vmatpush2.bf16.msra.mxu0 0
    %858 = vmatprep.subr.bf16.mxu0 0
    %859 = vmatpush2.bf16.msra.mxu0 0
    %860 = vmatprep.subr.bf16.mxu0 0
    %861 = vmatpush2.bf16.msra.mxu0 0
    %862 = vmatprep.subr.bf16.mxu0 0
    %863 = vmatpush2.bf16.msra.mxu0 0
    %864 = vmatprep.subr.bf16.mxu0 0
    %865 = vmatpush2.bf16.msra.mxu0 0
    %866 = vmatprep.subr.bf16.mxu0 0
    %867 = vmatpush2.bf16.msra.mxu0 0
    %868 = vmatprep.mubr.bf16.mxu0 0
    %869 = vmatmul.mubr.bf16.gmra.mxu0 %v835
    %v870 = vpop.f32.mrf.mxu0
    %v871 = vadd.f32 0.0, %v870
    %v872 = vpop.f32.mrf.mxu0
    %v873 = vadd.f32 0.0, %v872
    %v874 = vpop.f32.mrf.mxu0
    %v875 = vpop.f32.mrf.mxu0
    %876 = vdwg.mxu0
    %877 = vmatprep.subr.bf16.mxu0 %v483
    %878 = vmatpush1.bf16.msra.mxu0 %v482
    %879 = vmatprep.subr.bf16.mxu0 %v479
    %880 = vmatpush1.bf16.msra.mxu0 %v478
    %881 = vmatprep.subr.bf16.mxu0 %v475
    %882 = vmatpush1.bf16.msra.mxu0 %v474
    %883 = vmatprep.subr.bf16.mxu0 %v471
    %884 = vmatpush1.bf16.msra.mxu0 %v470
    %885 = vmatprep.subr.bf16.mxu0 %v467
    %886 = vmatpush1.bf16.msra.mxu0 %v466
    %887 = vmatprep.subr.bf16.mxu0 %v463
    %888 = vmatpush1.bf16.msra.mxu0 %v462
    %889 = vmatprep.subr.bf16.mxu0 %v459
    %890 = vmatpush1.bf16.msra.mxu0 %v458
    %891 = vmatprep.subr.bf16.mxu0 %v455
    %892 = vmatpush1.bf16.msra.mxu0 %v454
    %893 = vmatprep.subr.bf16.mxu0 0
    %894 = vmatpush2.bf16.msra.mxu0 0
    %895 = vmatprep.subr.bf16.mxu0 0
    %896 = vmatpush2.bf16.msra.mxu0 0
    %897 = vmatprep.subr.bf16.mxu0 0
    %898 = vmatpush2.bf16.msra.mxu0 0
    %899 = vmatprep.subr.bf16.mxu0 0
    %900 = vmatpush2.bf16.msra.mxu0 0
    %901 = vmatprep.subr.bf16.mxu0 0
    %902 = vmatpush2.bf16.msra.mxu0 0
    %903 = vmatprep.subr.bf16.mxu0 0
    %904 = vmatpush2.bf16.msra.mxu0 0
    %905 = vmatprep.subr.bf16.mxu0 0
    %906 = vmatpush2.bf16.msra.mxu0 0
    %907 = vmatprep.subr.bf16.mxu0 0
    %908 = vmatpush2.bf16.msra.mxu0 0
    %909 = vmatprep.mubr.bf16.mxu0 0
    %910 = vmatmul.mubr.bf16.gmra.mxu0 %v835
    %v911 = vpop.f32.mrf.mxu0
    %v912 = vadd.f32 0.0, %v911
    %v913 = vpop.f32.mrf.mxu0
    %v914 = vadd.f32 0.0, %v913
    %v915 = vpop.f32.mrf.mxu0
    %v916 = vpop.f32.mrf.mxu0
    %917 = vdwg.mxu0
    %v918 = vadd.f32 %v831, %v871
    %v919 = vadd.f32 %v832, %v873
    %v920 = vadd.f32 %v833, %v912
    %v921 = vadd.f32 %v834, %v914
    %v922 = vxor.u32 %v918, 2147483648
    %v923 = vmul.f32 %v922, 1.442695
    %v924 = vpow.pop %v923
    %v925 = vadd.f32 %v924, 1.0
    %v926 = vrcp.pop %v925
    %v927 = vmul.f32 1.0, %v926
    %v928 = vxor.u32 %v919, 2147483648
    %v929 = vmul.f32 %v928, 1.442695
    %v930 = vpow.pop %v929
    %v931 = vadd.f32 %v930, 1.0
    %v932 = vrcp.pop %v931
    %v933 = vmul.f32 1.0, %v932
    %v934 = vtanh.pop %v920
    %v935 = vxor.u32 %v921, 2147483648
    %v936 = vmul.f32 %v935, 1.442695
    %v937 = vpow.pop %v936
    %v938 = vadd.f32 %v937, 1.0
    %v939 = vrcp.pop %v938
    %v940 = vmul.f32 1.0, %v939
    %v941 = vmul.f32 %v933, %v827
    %v942 = vmul.f32 %v927, %v934
    %v943 = vadd.f32 %v941, %v942
    %v944 = vtanh.pop %v943
    %v945 = vmul.f32 %v940, %v944
    %s946 = scalar_lea.vmem [#allocation2], 128
    %v947 = vld [vmem:[%s946] sm:$0xff]
    %v948 = vld [vmem:[%s946 + $0x8] sm:$0xff]
    %v949 = vld [vmem:[%s946 + $0x10] sm:$0xff]
    %v950 = vld [vmem:[%s946 + $0x18] sm:$0xff]
    %v951 = vpack.c.bf16 %v945, %v945
    %952 = vmatprep.subr.bf16.mxu0 %v481
    %953 = vmatpush1.bf16.msra.mxu0 %v480
    %954 = vmatprep.subr.bf16.mxu0 %v477
    %955 = vmatpush1.bf16.msra.mxu0 %v476
    %956 = vmatprep.subr.bf16.mxu0 %v473
    %957 = vmatpush1.bf16.msra.mxu0 %v472
    %958 = vmatprep.subr.bf16.mxu0 %v469
    %959 = vmatpush1.bf16.msra.mxu0 %v468
    %960 = vmatprep.subr.bf16.mxu0 %v465
    %961 = vmatpush1.bf16.msra.mxu0 %v464
    %962 = vmatprep.subr.bf16.mxu0 %v461
    %963 = vmatpush1.bf16.msra.mxu0 %v460
    %964 = vmatprep.subr.bf16.mxu0 %v457
    %965 = vmatpush1.bf16.msra.mxu0 %v456
    %966 = vmatprep.subr.bf16.mxu0 %v453
    %967 = vmatpush1.bf16.msra.mxu0 %v452
    %968 = vmatprep.subr.bf16.mxu0 0
    %969 = vmatpush2.bf16.msra.mxu0 0
    %970 = vmatprep.subr.bf16.mxu0 0
    %971 = vmatpush2.bf16.msra.mxu0 0
    %972 = vmatprep.subr.bf16.mxu0 0
    %973 = vmatpush2.bf16.msra.mxu0 0
    %974 = vmatprep.subr.bf16.mxu0 0
    %975 = vmatpush2.bf16.msra.mxu0 0
    %976 = vmatprep.subr.bf16.mxu0 0
    %977 = vmatpush2.bf16.msra.mxu0 0
    %978 = vmatprep.subr.bf16.mxu0 0
    %979 = vmatpush2.bf16.msra.mxu0 0
    %980 = vmatprep.subr.bf16.mxu0 0
    %981 = vmatpush2.bf16.msra.mxu0 0
    %982 = vmatprep.subr.bf16.mxu0 0
    %983 = vmatpush2.bf16.msra.mxu0 0
    %984 = vmatprep.mubr.bf16.mxu0 0
    %985 = vmatmul.mubr.bf16.gmra.mxu0 %v951
    %v986 = vpop.f32.mrf.mxu0
    %v987 = vadd.f32 0.0, %v986
    %v988 = vpop.f32.mrf.mxu0
    %v989 = vadd.f32 0.0, %v988
    %v990 = vpop.f32.mrf.mxu0
    %v991 = vpop.f32.mrf.mxu0
    %992 = vdwg.mxu0
    %993 = vmatprep.subr.bf16.mxu0 %v483
    %994 = vmatpush1.bf16.msra.mxu0 %v482
    %995 = vmatprep.subr.bf16.mxu0 %v479
    %996 = vmatpush1.bf16.msra.mxu0 %v478
    %997 = vmatprep.subr.bf16.mxu0 %v475
    %998 = vmatpush1.bf16.msra.mxu0 %v474
    %999 = vmatprep.subr.bf16.mxu0 %v471
    %1000 = vmatpush1.bf16.msra.mxu0 %v470
    %1001 = vmatprep.subr.bf16.mxu0 %v467
    %1002 = vmatpush1.bf16.msra.mxu0 %v466
    %1003 = vmatprep.subr.bf16.mxu0 %v463
    %1004 = vmatpush1.bf16.msra.mxu0 %v462
    %1005 = vmatprep.subr.bf16.mxu0 %v459
    %1006 = vmatpush1.bf16.msra.mxu0 %v458
    %1007 = vmatprep.subr.bf16.mxu0 %v455
    %1008 = vmatpush1.bf16.msra.mxu0 %v454
    %1009 = vmatprep.subr.bf16.mxu0 0
    %1010 = vmatpush2.bf16.msra.mxu0 0
    %1011 = vmatprep.subr.bf16.mxu0 0
    %1012 = vmatpush2.bf16.msra.mxu0 0
    %1013 = vmatprep.subr.bf16.mxu0 0
    %1014 = vmatpush2.bf16.msra.mxu0 0
    %1015 = vmatprep.subr.bf16.mxu0 0
    %1016 = vmatpush2.bf16.msra.mxu0 0
    %1017 = vmatprep.subr.bf16.mxu0 0
    %1018 = vmatpush2.bf16.msra.mxu0 0
    %1019 = vmatprep.subr.bf16.mxu0 0
    %1020 = vmatpush2.bf16.msra.mxu0 0
    %1021 = vmatprep.subr.bf16.mxu0 0
    %1022 = vmatpush2.bf16.msra.mxu0 0
    %1023 = vmatprep.subr.bf16.mxu0 0
    %1024 = vmatpush2.bf16.msra.mxu0 0
    %1025 = vmatprep.mubr.bf16.mxu0 0
    %1026 = vmatmul.mubr.bf16.gmra.mxu0 %v951
    %v1027 = vpop.f32.mrf.mxu0
    %v1028 = vadd.f32 0.0, %v1027
    %v1029 = vpop.f32.mrf.mxu0
    %v1030 = vadd.f32 0.0, %v1029
    %v1031 = vpop.f32.mrf.mxu0
    %v1032 = vpop.f32.mrf.mxu0
    %1033 = vdwg.mxu0
    %v1034 = vadd.f32 %v947, %v987
    %v1035 = vadd.f32 %v948, %v989
    %v1036 = vadd.f32 %v949, %v1028
    %v1037 = vadd.f32 %v950, %v1030
    %v1038 = vxor.u32 %v1034, 2147483648
    %v1039 = vmul.f32 %v1038, 1.442695
    %v1040 = vpow.pop %v1039
    %v1041 = vadd.f32 %v1040, 1.0
    %v1042 = vrcp.pop %v1041
    %v1043 = vmul.f32 1.0, %v1042
    %v1044 = vxor.u32 %v1035, 2147483648
    %v1045 = vmul.f32 %v1044, 1.442695
    %v1046 = vpow.pop %v1045
    %v1047 = vadd.f32 %v1046, 1.0
    %v1048 = vrcp.pop %v1047
    %v1049 = vmul.f32 1.0, %v1048
    %v1050 = vtanh.pop %v1036
    %v1051 = vxor.u32 %v1037, 2147483648
    %v1052 = vmul.f32 %v1051, 1.442695
    %v1053 = vpow.pop %v1052
    %v1054 = vadd.f32 %v1053, 1.0
    %v1055 = vrcp.pop %v1054
    %v1056 = vmul.f32 1.0, %v1055
    %v1057 = vmul.f32 %v1049, %v943
    %v1058 = vmul.f32 %v1043, %v1050
    %v1059 = vadd.f32 %v1057, %v1058
    %v1060 = vtanh.pop %v1059
    %v1061 = vmul.f32 %v1056, %v1060
    %s1062 = scalar_lea.vmem [#allocation2], 160
    %v1063 = vld [vmem:[%s1062] sm:$0xff]
    %v1064 = vld [vmem:[%s1062 + $0x8] sm:$0xff]
    %v1065 = vld [vmem:[%s1062 + $0x10] sm:$0xff]
    %v1066 = vld [vmem:[%s1062 + $0x18] sm:$0xff]
    %v1067 = vpack.c.bf16 %v1061, %v1061
    %1068 = vmatprep.subr.bf16.mxu0 %v481
    %1069 = vmatpush1.bf16.msra.mxu0 %v480
    %1070 = vmatprep.subr.bf16.mxu0 %v477
    %1071 = vmatpush1.bf16.msra.mxu0 %v476
    %1072 = vmatprep.subr.bf16.mxu0 %v473
    %1073 = vmatpush1.bf16.msra.mxu0 %v472
    %1074 = vmatprep.subr.bf16.mxu0 %v469
    %1075 = vmatpush1.bf16.msra.mxu0 %v468
    %1076 = vmatprep.subr.bf16.mxu0 %v465
    %1077 = vmatpush1.bf16.msra.mxu0 %v464
    %1078 = vmatprep.subr.bf16.mxu0 %v461
    %1079 = vmatpush1.bf16.msra.mxu0 %v460
    %1080 = vmatprep.subr.bf16.mxu0 %v457
    %1081 = vmatpush1.bf16.msra.mxu0 %v456
    %1082 = vmatprep.subr.bf16.mxu0 %v453
    %1083 = vmatpush1.bf16.msra.mxu0 %v452
    %1084 = vmatprep.subr.bf16.mxu0 0
    %1085 = vmatpush2.bf16.msra.mxu0 0
    %1086 = vmatprep.subr.bf16.mxu0 0
    %1087 = vmatpush2.bf16.msra.mxu0 0
    %1088 = vmatprep.subr.bf16.mxu0 0
    %1089 = vmatpush2.bf16.msra.mxu0 0
    %1090 = vmatprep.subr.bf16.mxu0 0
    %1091 = vmatpush2.bf16.msra.mxu0 0
    %1092 = vmatprep.subr.bf16.mxu0 0
    %1093 = vmatpush2.bf16.msra.mxu0 0
    %1094 = vmatprep.subr.bf16.mxu0 0
    %1095 = vmatpush2.bf16.msra.mxu0 0
    %1096 = vmatprep.subr.bf16.mxu0 0
    %1097 = vmatpush2.bf16.msra.mxu0 0
    %1098 = vmatprep.subr.bf16.mxu0 0
    %1099 = vmatpush2.bf16.msra.mxu0 0
    %1100 = vmatprep.mubr.bf16.mxu0 0
    %1101 = vmatmul.mubr.bf16.gmra.mxu0 %v1067
    %v1102 = vpop.f32.mrf.mxu0
    %v1103 = vadd.f32 0.0, %v1102
    %v1104 = vpop.f32.mrf.mxu0
    %v1105 = vadd.f32 0.0, %v1104
    %v1106 = vpop.f32.mrf.mxu0
    %v1107 = vpop.f32.mrf.mxu0
    %1108 = vdwg.mxu0
    %1109 = vmatprep.subr.bf16.mxu0 %v483
    %1110 = vmatpush1.bf16.msra.mxu0 %v482
    %1111 = vmatprep.subr.bf16.mxu0 %v479
    %1112 = vmatpush1.bf16.msra.mxu0 %v478
    %1113 = vmatprep.subr.bf16.mxu0 %v475
    %1114 = vmatpush1.bf16.msra.mxu0 %v474
    %1115 = vmatprep.subr.bf16.mxu0 %v471
    %1116 = vmatpush1.bf16.msra.mxu0 %v470
    %1117 = vmatprep.subr.bf16.mxu0 %v467
    %1118 = vmatpush1.bf16.msra.mxu0 %v466
    %1119 = vmatprep.subr.bf16.mxu0 %v463
    %1120 = vmatpush1.bf16.msra.mxu0 %v462
    %1121 = vmatprep.subr.bf16.mxu0 %v459
    %1122 = vmatpush1.bf16.msra.mxu0 %v458
    %1123 = vmatprep.subr.bf16.mxu0 %v455
    %1124 = vmatpush1.bf16.msra.mxu0 %v454
    %1125 = vmatprep.subr.bf16.mxu0 0
    %1126 = vmatpush2.bf16.msra.mxu0 0
    %1127 = vmatprep.subr.bf16.mxu0 0
    %1128 = vmatpush2.bf16.msra.mxu0 0
    %1129 = vmatprep.subr.bf16.mxu0 0
    %1130 = vmatpush2.bf16.msra.mxu0 0
    %1131 = vmatprep.subr.bf16.mxu0 0
    %1132 = vmatpush2.bf16.msra.mxu0 0
    %1133 = vmatprep.subr.bf16.mxu0 0
    %1134 = vmatpush2.bf16.msra.mxu0 0
    %1135 = vmatprep.subr.bf16.mxu0 0
    %1136 = vmatpush2.bf16.msra.mxu0 0
    %1137 = vmatprep.subr.bf16.mxu0 0
    %1138 = vmatpush2.bf16.msra.mxu0 0
    %1139 = vmatprep.subr.bf16.mxu0 0
    %1140 = vmatpush2.bf16.msra.mxu0 0
    %1141 = vmatprep.mubr.bf16.mxu0 0
    %1142 = vmatmul.mubr.bf16.gmra.mxu0 %v1067
    %v1143 = vpop.f32.mrf.mxu0
    %v1144 = vadd.f32 0.0, %v1143
    %v1145 = vpop.f32.mrf.mxu0
    %v1146 = vadd.f32 0.0, %v1145
    %v1147 = vpop.f32.mrf.mxu0
    %v1148 = vpop.f32.mrf.mxu0
    %1149 = vdwg.mxu0
    %v1150 = vadd.f32 %v1063, %v1103
    %v1151 = vadd.f32 %v1064, %v1105
    %v1152 = vadd.f32 %v1065, %v1144
    %v1153 = vadd.f32 %v1066, %v1146
    %v1154 = vxor.u32 %v1150, 2147483648
    %v1155 = vmul.f32 %v1154, 1.442695
    %v1156 = vpow.pop %v1155
    %v1157 = vadd.f32 %v1156, 1.0
    %v1158 = vrcp.pop %v1157
    %v1159 = vmul.f32 1.0, %v1158
    %v1160 = vxor.u32 %v1151, 2147483648
    %v1161 = vmul.f32 %v1160, 1.442695
    %v1162 = vpow.pop %v1161
    %v1163 = vadd.f32 %v1162, 1.0
    %v1164 = vrcp.pop %v1163
    %v1165 = vmul.f32 1.0, %v1164
    %v1166 = vtanh.pop %v1152
    %v1167 = vxor.u32 %v1153, 2147483648
    %v1168 = vmul.f32 %v1167, 1.442695
    %v1169 = vpow.pop %v1168
    %v1170 = vadd.f32 %v1169, 1.0
    %v1171 = vrcp.pop %v1170
    %v1172 = vmul.f32 1.0, %v1171
    %v1173 = vmul.f32 %v1165, %v1059
    %v1174 = vmul.f32 %v1159, %v1166
    %v1175 = vadd.f32 %v1173, %v1174
    %v1176 = vtanh.pop %v1175
    %v1177 = vmul.f32 %v1172, %v1176
    %s1178 = scalar_lea.vmem [#allocation2], 192
    %v1179 = vld [vmem:[%s1178] sm:$0xff]
    %v1180 = vld [vmem:[%s1178 + $0x8] sm:$0xff]
    %v1181 = vld [vmem:[%s1178 + $0x10] sm:$0xff]
    %v1182 = vld [vmem:[%s1178 + $0x18] sm:$0xff]
    %v1183 = vpack.c.bf16 %v1177, %v1177
    %1184 = vmatprep.subr.bf16.mxu0 %v481
    %1185 = vmatpush1.bf16.msra.mxu0 %v480
    %1186 = vmatprep.subr.bf16.mxu0 %v477
    %1187 = vmatpush1.bf16.msra.mxu0 %v476
    %1188 = vmatprep.subr.bf16.mxu0 %v473
    %1189 = vmatpush1.bf16.msra.mxu0 %v472
    %1190 = vmatprep.subr.bf16.mxu0 %v469
    %1191 = vmatpush1.bf16.msra.mxu0 %v468
    %1192 = vmatprep.subr.bf16.mxu0 %v465
    %1193 = vmatpush1.bf16.msra.mxu0 %v464
    %1194 = vmatprep.subr.bf16.mxu0 %v461
    %1195 = vmatpush1.bf16.msra.mxu0 %v460
    %1196 = vmatprep.subr.bf16.mxu0 %v457
    %1197 = vmatpush1.bf16.msra.mxu0 %v456
    %1198 = vmatprep.subr.bf16.mxu0 %v453
    %1199 = vmatpush1.bf16.msra.mxu0 %v452
    %1200 = vmatprep.subr.bf16.mxu0 0
    %1201 = vmatpush2.bf16.msra.mxu0 0
    %1202 = vmatprep.subr.bf16.mxu0 0
    %1203 = vmatpush2.bf16.msra.mxu0 0
    %1204 = vmatprep.subr.bf16.mxu0 0
    %1205 = vmatpush2.bf16.msra.mxu0 0
    %1206 = vmatprep.subr.bf16.mxu0 0
    %1207 = vmatpush2.bf16.msra.mxu0 0
    %1208 = vmatprep.subr.bf16.mxu0 0
    %1209 = vmatpush2.bf16.msra.mxu0 0
    %1210 = vmatprep.subr.bf16.mxu0 0
    %1211 = vmatpush2.bf16.msra.mxu0 0
    %1212 = vmatprep.subr.bf16.mxu0 0
    %1213 = vmatpush2.bf16.msra.mxu0 0
    %1214 = vmatprep.subr.bf16.mxu0 0
    %1215 = vmatpush2.bf16.msra.mxu0 0
    %1216 = vmatprep.mubr.bf16.mxu0 0
    %1217 = vmatmul.mubr.bf16.gmra.mxu0 %v1183
    %v1218 = vpop.f32.mrf.mxu0
    %v1219 = vadd.f32 0.0, %v1218
    %v1220 = vpop.f32.mrf.mxu0
    %v1221 = vadd.f32 0.0, %v1220
    %v1222 = vpop.f32.mrf.mxu0
    %v1223 = vpop.f32.mrf.mxu0
    %1224 = vdwg.mxu0
    %1225 = vmatprep.subr.bf16.mxu0 %v483
    %1226 = vmatpush1.bf16.msra.mxu0 %v482
    %1227 = vmatprep.subr.bf16.mxu0 %v479
    %1228 = vmatpush1.bf16.msra.mxu0 %v478
    %1229 = vmatprep.subr.bf16.mxu0 %v475
    %1230 = vmatpush1.bf16.msra.mxu0 %v474
    %1231 = vmatprep.subr.bf16.mxu0 %v471
    %1232 = vmatpush1.bf16.msra.mxu0 %v470
    %1233 = vmatprep.subr.bf16.mxu0 %v467
    %1234 = vmatpush1.bf16.msra.mxu0 %v466
    %1235 = vmatprep.subr.bf16.mxu0 %v463
    %1236 = vmatpush1.bf16.msra.mxu0 %v462
    %1237 = vmatprep.subr.bf16.mxu0 %v459
    %1238 = vmatpush1.bf16.msra.mxu0 %v458
    %1239 = vmatprep.subr.bf16.mxu0 %v455
    %1240 = vmatpush1.bf16.msra.mxu0 %v454
    %1241 = vmatprep.subr.bf16.mxu0 0
    %1242 = vmatpush2.bf16.msra.mxu0 0
    %1243 = vmatprep.subr.bf16.mxu0 0
    %1244 = vmatpush2.bf16.msra.mxu0 0
    %1245 = vmatprep.subr.bf16.mxu0 0
    %1246 = vmatpush2.bf16.msra.mxu0 0
    %1247 = vmatprep.subr.bf16.mxu0 0
    %1248 = vmatpush2.bf16.msra.mxu0 0
    %1249 = vmatprep.subr.bf16.mxu0 0
    %1250 = vmatpush2.bf16.msra.mxu0 0
    %1251 = vmatprep.subr.bf16.mxu0 0
    %1252 = vmatpush2.bf16.msra.mxu0 0
    %1253 = vmatprep.subr.bf16.mxu0 0
    %1254 = vmatpush2.bf16.msra.mxu0 0
    %1255 = vmatprep.subr.bf16.mxu0 0
    %1256 = vmatpush2.bf16.msra.mxu0 0
    %1257 = vmatprep.mubr.bf16.mxu0 0
    %1258 = vmatmul.mubr.bf16.gmra.mxu0 %v1183
    %v1259 = vpop.f32.mrf.mxu0
    %v1260 = vadd.f32 0.0, %v1259
    %v1261 = vpop.f32.mrf.mxu0
    %v1262 = vadd.f32 0.0, %v1261
    %v1263 = vpop.f32.mrf.mxu0
    %v1264 = vpop.f32.mrf.mxu0
    %1265 = vdwg.mxu0
    %v1266 = vadd.f32 %v1179, %v1219
    %v1267 = vadd.f32 %v1180, %v1221
    %v1268 = vadd.f32 %v1181, %v1260
    %v1269 = vadd.f32 %v1182, %v1262
    %v1270 = vxor.u32 %v1266, 2147483648
    %v1271 = vmul.f32 %v1270, 1.442695
    %v1272 = vpow.pop %v1271
    %v1273 = vadd.f32 %v1272, 1.0
    %v1274 = vrcp.pop %v1273
    %v1275 = vmul.f32 1.0, %v1274
    %v1276 = vxor.u32 %v1267, 2147483648
    %v1277 = vmul.f32 %v1276, 1.442695
    %v1278 = vpow.pop %v1277
    %v1279 = vadd.f32 %v1278, 1.0
    %v1280 = vrcp.pop %v1279
    %v1281 = vmul.f32 1.0, %v1280
    %v1282 = vtanh.pop %v1268
    %v1283 = vxor.u32 %v1269, 2147483648
    %v1284 = vmul.f32 %v1283, 1.442695
    %v1285 = vpow.pop %v1284
    %v1286 = vadd.f32 %v1285, 1.0
    %v1287 = vrcp.pop %v1286
    %v1288 = vmul.f32 1.0, %v1287
    %v1289 = vmul.f32 %v1281, %v1175
    %v1290 = vmul.f32 %v1275, %v1282
    %v1291 = vadd.f32 %v1289, %v1290
    %v1292 = vtanh.pop %v1291
    %v1293 = vmul.f32 %v1288, %v1292
    %s1294 = scalar_lea.vmem [#allocation2], 224
    %v1295 = vld [vmem:[%s1294] sm:$0xff]
    %v1296 = vld [vmem:[%s1294 + $0x8] sm:$0xff]
    %v1297 = vld [vmem:[%s1294 + $0x10] sm:$0xff]
    %v1298 = vld [vmem:[%s1294 + $0x18] sm:$0xff]
    %v1299 = vpack.c.bf16 %v1293, %v1293
    %1300 = vmatprep.subr.bf16.mxu0 %v481
    %1301 = vmatpush1.bf16.msra.mxu0 %v480
    %1302 = vmatprep.subr.bf16.mxu0 %v477
    %1303 = vmatpush1.bf16.msra.mxu0 %v476
    %1304 = vmatprep.subr.bf16.mxu0 %v473
    %1305 = vmatpush1.bf16.msra.mxu0 %v472
    %1306 = vmatprep.subr.bf16.mxu0 %v469
    %1307 = vmatpush1.bf16.msra.mxu0 %v468
    %1308 = vmatprep.subr.bf16.mxu0 %v465
    %1309 = vmatpush1.bf16.msra.mxu0 %v464
    %1310 = vmatprep.subr.bf16.mxu0 %v461
    %1311 = vmatpush1.bf16.msra.mxu0 %v460
    %1312 = vmatprep.subr.bf16.mxu0 %v457
    %1313 = vmatpush1.bf16.msra.mxu0 %v456
    %1314 = vmatprep.subr.bf16.mxu0 %v453
    %1315 = vmatpush1.bf16.msra.mxu0 %v452
    %1316 = vmatprep.subr.bf16.mxu0 0
    %1317 = vmatpush2.bf16.msra.mxu0 0
    %1318 = vmatprep.subr.bf16.mxu0 0
    %1319 = vmatpush2.bf16.msra.mxu0 0
    %1320 = vmatprep.subr.bf16.mxu0 0
    %1321 = vmatpush2.bf16.msra.mxu0 0
    %1322 = vmatprep.subr.bf16.mxu0 0
    %1323 = vmatpush2.bf16.msra.mxu0 0
    %1324 = vmatprep.subr.bf16.mxu0 0
    %1325 = vmatpush2.bf16.msra.mxu0 0
    %1326 = vmatprep.subr.bf16.mxu0 0
    %1327 = vmatpush2.bf16.msra.mxu0 0
    %1328 = vmatprep.subr.bf16.mxu0 0
    %1329 = vmatpush2.bf16.msra.mxu0 0
    %1330 = vmatprep.subr.bf16.mxu0 0
    %1331 = vmatpush2.bf16.msra.mxu0 0
    %1332 = vmatprep.mubr.bf16.mxu0 0
    %1333 = vmatmul.mubr.bf16.gmra.mxu0 %v1299
    %v1334 = vpop.f32.mrf.mxu0
    %v1335 = vadd.f32 0.0, %v1334
    %v1336 = vpop.f32.mrf.mxu0
    %v1337 = vadd.f32 0.0, %v1336
    %v1338 = vpop.f32.mrf.mxu0
    %v1339 = vpop.f32.mrf.mxu0
    %1340 = vdwg.mxu0
    %1341 = vmatprep.subr.bf16.mxu0 %v483
    %1342 = vmatpush1.bf16.msra.mxu0 %v482
    %1343 = vmatprep.subr.bf16.mxu0 %v479
    %1344 = vmatpush1.bf16.msra.mxu0 %v478
    %1345 = vmatprep.subr.bf16.mxu0 %v475
    %1346 = vmatpush1.bf16.msra.mxu0 %v474
    %1347 = vmatprep.subr.bf16.mxu0 %v471
    %1348 = vmatpush1.bf16.msra.mxu0 %v470
    %1349 = vmatprep.subr.bf16.mxu0 %v467
    %1350 = vmatpush1.bf16.msra.mxu0 %v466
    %1351 = vmatprep.subr.bf16.mxu0 %v463
    %1352 = vmatpush1.bf16.msra.mxu0 %v462
    %1353 = vmatprep.subr.bf16.mxu0 %v459
    %1354 = vmatpush1.bf16.msra.mxu0 %v458
    %1355 = vmatprep.subr.bf16.mxu0 %v455
    %1356 = vmatpush1.bf16.msra.mxu0 %v454
    %1357 = vmatprep.subr.bf16.mxu0 0
    %1358 = vmatpush2.bf16.msra.mxu0 0
    %1359 = vmatprep.subr.bf16.mxu0 0
    %1360 = vmatpush2.bf16.msra.mxu0 0
    %1361 = vmatprep.subr.bf16.mxu0 0
    %1362 = vmatpush2.bf16.msra.mxu0 0
    %1363 = vmatprep.subr.bf16.mxu0 0
    %1364 = vmatpush2.bf16.msra.mxu0 0
    %1365 = vmatprep.subr.bf16.mxu0 0
    %1366 = vmatpush2.bf16.msra.mxu0 0
    %1367 = vmatprep.subr.bf16.mxu0 0
    %1368 = vmatpush2.bf16.msra.mxu0 0
    %1369 = vmatprep.subr.bf16.mxu0 0
    %1370 = vmatpush2.bf16.msra.mxu0 0
    %1371 = vmatprep.subr.bf16.mxu0 0
    %1372 = vmatpush2.bf16.msra.mxu0 0
    %1373 = vmatprep.mubr.bf16.mxu0 0
    %1374 = vmatmul.mubr.bf16.gmra.mxu0 %v1299
    %v1375 = vpop.f32.mrf.mxu0
    %v1376 = vadd.f32 0.0, %v1375
    %v1377 = vpop.f32.mrf.mxu0
    %v1378 = vadd.f32 0.0, %v1377
    %v1379 = vpop.f32.mrf.mxu0
    %v1380 = vpop.f32.mrf.mxu0
    %1381 = vdwg.mxu0
    %v1382 = vadd.f32 %v1295, %v1335
    %v1383 = vadd.f32 %v1296, %v1337
    %v1384 = vadd.f32 %v1297, %v1376
    %v1385 = vadd.f32 %v1298, %v1378
    %v1386 = vxor.u32 %v1382, 2147483648
    %v1387 = vmul.f32 %v1386, 1.442695
    %v1388 = vpow.pop %v1387
    %v1389 = vadd.f32 %v1388, 1.0
    %v1390 = vrcp.pop %v1389
    %v1391 = vmul.f32 1.0, %v1390
    %v1392 = vxor.u32 %v1383, 2147483648
    %v1393 = vmul.f32 %v1392, 1.442695
    %v1394 = vpow.pop %v1393
    %v1395 = vadd.f32 %v1394, 1.0
    %v1396 = vrcp.pop %v1395
    %v1397 = vmul.f32 1.0, %v1396
    %v1398 = vtanh.pop %v1384
    %v1399 = vxor.u32 %v1385, 2147483648
    %v1400 = vmul.f32 %v1399, 1.442695
    %v1401 = vpow.pop %v1400
    %v1402 = vadd.f32 %v1401, 1.0
    %v1403 = vrcp.pop %v1402
    %v1404 = vmul.f32 1.0, %v1403
    %v1405 = vmul.f32 %v1397, %v1291
    %v1406 = vmul.f32 %v1391, %v1398
    %v1407 = vadd.f32 %v1405, %v1406
    %v1408 = vtanh.pop %v1407
    %v1409 = vmul.f32 %v1404, %v1408
    %v1410 = vpack.c.bf16 %v1409, %v1409
    %v1411 = vld [vmem:[#allocation9] sm:$0xff]
    %v1412 = vld [vmem:[#allocation9 + $0x8] sm:$0xff]
    %v1413 = vld [vmem:[#allocation9 + $0x10] sm:$0xff]
    %v1414 = vld [vmem:[#allocation9 + $0x18] sm:$0xff]
    %v1415 = vld [vmem:[#allocation9 + $0x20] sm:$0xff]
    %v1416 = vld [vmem:[#allocation9 + $0x28] sm:$0xff]
    %v1417 = vld [vmem:[#allocation9 + $0x30] sm:$0xff]
    %v1418 = vld [vmem:[#allocation9 + $0x38] sm:$0xff]
    %v1419 = vld [vmem:[#allocation9 + $0x40] sm:$0xff]
    %v1420 = vld [vmem:[#allocation9 + $0x48] sm:$0xff]
    %v1421 = vld [vmem:[#allocation9 + $0x50] sm:$0xff]
    %v1422 = vld [vmem:[#allocation9 + $0x58] sm:$0xff]
    %v1423 = vld [vmem:[#allocation9 + $0x60] sm:$0xff]
    %v1424 = vld [vmem:[#allocation9 + $0x68] sm:$0xff]
    %v1425 = vld [vmem:[#allocation9 + $0x70] sm:$0xff]
    %v1426 = vld [vmem:[#allocation9 + $0x78] sm:$0xff]
    %v1427 = vpack.c.bf16 %v1412, %v1411
    %v1428 = vpack.c.bf16 %v1414, %v1413
    %v1429 = vpack.c.bf16 %v1416, %v1415
    %v1430 = vpack.c.bf16 %v1418, %v1417
    %v1431 = vpack.c.bf16 %v1420, %v1419
    %v1432 = vpack.c.bf16 %v1422, %v1421
    %v1433 = vpack.c.bf16 %v1424, %v1423
    %v1434 = vpack.c.bf16 %v1426, %v1425
    %v1435 = vld [vmem:[%s5] sm:$0x1]
    %v1437 = vlaneseq
    %v1438 = vshrl.u32 %v1437, 7
    %v1439 = vsub.s32 0, %v1438
    %v1440 = vrot.slane %v1435, %v1439
    %1442 = vmatprep.subr.bf16.mxu0 0
    %1443 = vmatpush1.bf16.msra.mxu0 %v1434
    %1444 = vmatprep.subr.bf16.mxu0 0
    %1445 = vmatpush1.bf16.msra.mxu0 %v1433
    %1446 = vmatprep.subr.bf16.mxu0 0
    %1447 = vmatpush1.bf16.msra.mxu0 %v1432
    %1448 = vmatprep.subr.bf16.mxu0 0
    %1449 = vmatpush1.bf16.msra.mxu0 %v1431
    %1450 = vmatprep.subr.bf16.mxu0 0
    %1451 = vmatpush1.bf16.msra.mxu0 %v1430
    %1452 = vmatprep.subr.bf16.mxu0 0
    %1453 = vmatpush1.bf16.msra.mxu0 %v1429
    %1454 = vmatprep.subr.bf16.mxu0 0
    %1455 = vmatpush1.bf16.msra.mxu0 %v1428
    %1456 = vmatprep.subr.bf16.mxu0 0
    %1457 = vmatpush1.bf16.msra.mxu0 %v1427
    %1458 = vmatprep.subr.bf16.mxu0 0
    %1459 = vmatpush2.bf16.msra.mxu0 0
    %1460 = vmatprep.subr.bf16.mxu0 0
    %1461 = vmatpush2.bf16.msra.mxu0 0
    %1462 = vmatprep.subr.bf16.mxu0 0
    %1463 = vmatpush2.bf16.msra.mxu0 0
    %1464 = vmatprep.subr.bf16.mxu0 0
    %1465 = vmatpush2.bf16.msra.mxu0 0
    %1466 = vmatprep.subr.bf16.mxu0 0
    %1467 = vmatpush2.bf16.msra.mxu0 0
    %1468 = vmatprep.subr.bf16.mxu0 0
    %1469 = vmatpush2.bf16.msra.mxu0 0
    %1470 = vmatprep.subr.bf16.mxu0 0
    %1471 = vmatpush2.bf16.msra.mxu0 0
    %1472 = vmatprep.subr.bf16.mxu0 0
    %1473 = vmatpush2.bf16.msra.mxu0 0
    %1474 = vmatprep.mubr.bf16.mxu0 0
    %1475 = vmatmul.mubr.bf16.gmra.mxu0 %v1410
    %v1476 = vpop.f32.mrf.mxu0
    %v1477 = vadd.f32 %v1440, %v1476
    %v1478 = vpop.f32.mrf.mxu0
    %v1479 = vpop.f32.mrf.mxu0
    %v1480 = vpop.f32.mrf.mxu0
    %1481 = vdwg.mxu0
    %1482 = vst [vmem:[#allocation11] sm:$0xff] %v1477
    // Predicated region
    $region42: #{tpu_custom_call.1} parent=1 // pred_check
      _
    $region43: #{tpu_custom_call.1} parent=1 // pred_check_branch
      %1484 = sbr.rel (0) target = $region45
    $region44: #{tpu_custom_call.1} parent=1 // pred_region
      %s1486 = ssub.s32 128, 128
      %1487 = vsyncadd [#allocation5], %s1486
      %s1489 = sshll.u32 [#allocation11], 4
      %s1490 = int_to_ptr.vmem [resolvable:$true] %s1489
      %1492 = dma.vmem_to_hbm [thread:$0]  %s1490, 128, %s6, [#allocation5]
    $region45: #{tpu_custom_call.1} parent=1 // pred_fallthru
      _
    // Predicated region
    $region46: #{tpu_custom_call.1} parent=1 // pred_check
      _
    $region47: #{tpu_custom_call.1} parent=1 // pred_check_branch
      %1494 = sbr.rel (0) target = $region49
    $region48: #{tpu_custom_call.1} parent=1 // pred_region
      %1495 = dma.done [#allocation5], 128
    $region49: #{tpu_custom_call.1} parent=1 // pred_fallthru
      _
    %1496 = vsyncpa [#allocation4], 1
    %1497 = vsyncpa [#allocation7], 1
    %1498 = vsyncpa [#allocation10], 1
    %1499 = vsyncpa [#allocation5], 1

</llo_original>
